<compile_context>
chip_gen: v6e
topology: v6e:2x2x1
jax: 0.10.0
libtpu: 0.0.40
codegen_flags: <defaults>
</compile_context>

<pallas_src>
import jax
import jax.numpy as jnp
from jax.experimental import pallas as pl
from jax.experimental.pallas import tpu as pltpu

NUM_CLASSES = 19
IGNORE = -1
LANES = 128
SUB = 8
MAX_TILE_PIXELS = 32768          # 256 sublane-rows x 128 lanes per grid step


def _round_up(x, m):
    return ((x + m - 1) // m) * m


# ----------------------------------------------------------------------------
# Fused kernel: per-class partial NLL sums + per-class counts.
# ----------------------------------------------------------------------------
def _fused_wce_kernel(logits_ref, tgt_ref, nll_ref, cnt_ref):
    # logits_ref: (1, C, R, 128) ; tgt_ref: (1, R, 128)
    # nll_ref / cnt_ref: (1, C, 8, 128) accumulators, resident across the spatial axis.
    @pl.when(pl.program_id(1) == 0)
    def _():
        nll_ref[...] = jnp.zeros_like(nll_ref)
        cnt_ref[...] = jnp.zeros_like(cnt_ref)

    logits = logits_ref[0].astype(jnp.float32)      # (C, R, 128)
    tgt = tgt_ref[0]                                # (R, 128) int32
    r = tgt.shape[0]
    g = r // SUB                                    # vreg-row groups (r is a multiple of 8)

    # Softmax statistics over the 19 class planes: pure elementwise VPU/EUP work.
    m = jnp.max(logits, axis=0)                     # (R, 128)
    esum = jnp.sum(jnp.exp(logits - m), axis=0)     # (R, 128)
    lse = m + jnp.log(esum)                         # (R, 128)

    # Per-class accumulation.  On pixels where target == c the target-class logit is
    # logits[c], so nll = lse - logits[c] there; ignore (-1) and spatial-padding pixels
    # match no class and contribute nothing to either sum (exactly ignore_index).
    for c in range(NUM_CLASSES):
        mask = tgt == c
        nll_c = jnp.where(mask, lse - logits[c], 0.0)     # (R, 128)
        cnt_c = jnp.where(mask, 1.0, 0.0)                 # (R, 128)
        # Fold R rows into 8 sublanes with plane-wise adds (no cross-lane reduce).
        nll_ref[0, c] += nll_c.reshape(g, SUB, LANES).sum(axis=0)
        cnt_ref[0, c] += cnt_c.reshape(g, SUB, LANES).sum(axis=0)


def _per_class_partials(logits_nchw, tgt3d, tile_pixels):
    """Returns per-class (19,) NLL sums and per-class (19,) valid-pixel counts."""
    n, c, h, w = logits_nchw.shape
    s = h * w
    s_pad = tgt3d.shape[1] * LANES
    r = tile_pixels // LANES

    lg = logits_nchw.astype(jnp.float32).reshape(n, c, s)
    if s_pad > s:
        lg = jnp.pad(lg, ((0, 0), (0, 0), (0, s_pad - s)))
    lg = lg.reshape(n, c, s_pad // LANES, LANES)

    nll, cnt = pl.pallas_call(
        _fused_wce_kernel,
        out_shape=(
            jax.ShapeDtypeStruct((n, NUM_CLASSES, SUB, LANES), jnp.float32),
            jax.ShapeDtypeStruct((n, NUM_CLASSES, SUB, LANES), jnp.float32),
        ),
        grid_spec=pltpu.PrefetchScalarGridSpec(
            num_scalar_prefetch=0,
            grid=(n, s_pad // tile_pixels),
            in_specs=[
                pl.BlockSpec((1, c, r, LANES), lambda ni, ti: (ni, 0, ti, 0)),
                pl.BlockSpec((1, r, LANES), lambda ni, ti: (ni, ti, 0)),
            ],
            out_specs=[
                pl.BlockSpec((1, NUM_CLASSES, SUB, LANES), lambda ni, ti: (ni, 0, 0, 0)),
                pl.BlockSpec((1, NUM_CLASSES, SUB, LANES), lambda ni, ti: (ni, 0, 0, 0)),
            ],
        ),
        compiler_params=pltpu.CompilerParams(
            dimension_semantics=("parallel", "arbitrary")),
    )(lg, tgt3d)

    # Tiny final reductions (19*8*128*N elements) done in plain JAX.
    s_nll = jnp.sum(nll, axis=(0, 2, 3))        # (19,)
    s_cnt = jnp.sum(cnt, axis=(0, 2, 3))        # (19,)
    return s_nll, s_cnt


# ----------------------------------------------------------------------------
# Wrapper reproducing WeightedCrossEntropyLoss.forward
# ----------------------------------------------------------------------------
def weighted_cross_entropy_loss(output, target):
    """output: (N, 19, H, W) f32 logits (or a list of such), target: (N, H, W) int labels."""
    outs = list(output) if isinstance(output, (list, tuple)) else [output]

    n = target.shape[0]
    s = 1
    for d in target.shape[1:]:
        s *= d
    total_num = float(n * s)                     # prod(target.shape), includes ignore pixels

    # Tile sizing: spatial axis padded to a multiple of 1024 pixels (so each tile is a
    # whole number of (8,128) vreg tiles), capped at MAX_TILE_PIXELS per grid step.
    tile_pixels = min(MAX_TILE_PIXELS, _round_up(s, SUB * LANES))
    s_pad = _round_up(s, tile_pixels)

    tgt = target.reshape(n, s).astype(jnp.int32)
    if s_pad > s:
        tgt = jnp.pad(tgt, ((0, 0), (0, s_pad - s)), constant_values=IGNORE)
    tgt3d = tgt.reshape(n, s_pad // LANES, LANES)

    loss = None
    for o in outs:
        s_nll, s_cnt = _per_class_partials(o, tgt3d, tile_pixels)
        weight = 1.0 - s_cnt / total_num                         # (19,) class weights
        term = jnp.sum(weight * s_nll) / jnp.sum(weight * s_cnt)  # weighted-mean CE
        loss = term if loss is None else loss + term
    return loss


# ----------------------------------------------------------------------------
# Plain-JAX reference (for self-check)
# ----------------------------------------------------------------------------
def _ref_loss(output, target):
    tflat = target.reshape(-1)
    total = float(tflat.shape[0])
    counts = jnp.stack([jnp.sum((tflat == i).astype(jnp.float32))
                        for i in range(NUM_CLASSES)])
    w = 1.0 - counts / total

    def single(lg):
        n, c, h, wd = lg.shape
        lp = jax.nn.log_softmax(
            jnp.transpose(lg, (0, 2, 3, 1)).reshape(-1, c), axis=-1)
        valid = tflat != IGNORE
        tsafe = jnp.where(valid, tflat, 0)
        nll = -jnp.take_along_axis(lp, tsafe[:, None], axis=1)[:, 0]
        wt = w[tsafe] * valid.astype(jnp.float32)
        return jnp.sum(wt * nll) / jnp.sum(wt)

    if isinstance(output, (list, tuple)):
        return sum(single(o) for o in output)
    return single(output)


if __name__ == "__main__":
    key = jax.random.PRNGKey(0)
    k1, k2, k3 = jax.random.split(key, 3)

    N, C, H, W = 2, NUM_CLASSES, 16, 16
    logits = jax.random.normal(k1, (N, C, H, W), dtype=jnp.float32)
    logits2 = jax.random.normal(k3, (N, C, H, W), dtype=jnp.float32)
    # labels in [-1, 19): includes some ignore_index pixels
    target = jax.random.randint(k2, (N, H, W), -1, NUM_CLASSES, dtype=jnp.int32)

    # single-output path
    loss = jax.block_until_ready(weighted_cross_entropy_loss(logits, target))
    ref = jax.block_until_ready(_ref_loss(logits, target))
    assert jnp.allclose(loss, ref, rtol=1e-4, atol=1e-5), (loss, ref)

    # list-output path
    loss_l = jax.block_until_ready(weighted_cross_entropy_loss([logits, logits2], target))
    ref_l = jax.block_until_ready(_ref_loss([logits, logits2], target))
    assert jnp.allclose(loss_l, ref_l, rtol=1e-4, atol=1e-5), (loss_l, ref_l)

    print("KERNEL_OK")
</pallas_src>

<mosaic_0001>
module attributes {stable_mosaic.version = 11 : i64} {
  func.func @_fused_wce_kernel(%arg0: i32, %arg1: i32, %arg2: memref<1x19x8x128xf32, #tpu.memory_space<vmem>>, %arg3: memref<1x8x128xi32, #tpu.memory_space<vmem>>, %arg4: memref<1x19x8x128xf32, #tpu.memory_space<vmem>>, %arg5: memref<1x19x8x128xf32, #tpu.memory_space<vmem>>) attributes {dimension_semantics = [#tpu.dimension_semantics<parallel>, #tpu.dimension_semantics<arbitrary>], iteration_bounds = array<i64: 2, 1>, scalar_prefetch = 0 : i64, scratch_operands = 0 : i64, tpu.core_type = #tpu.core_type<tc>, window_params = [{transform_indices = @transform_0, window_bounds = array<i64: 1, 19, 8, 128>}, {transform_indices = @transform_1, window_bounds = array<i64: 1, 8, 128>}, {transform_indices = @transform_2, window_bounds = array<i64: 1, 19, 8, 128>}, {transform_indices = @transform_3, window_bounds = array<i64: 1, 19, 8, 128>}]} {
    %c0_i32 = arith.constant 0 : i32
    %0 = arith.cmpi eq, %arg1, %c0_i32 : i32
    %1 = arith.extui %0 : i1 to i32
    %c0_i32_0 = arith.constant 0 : i32
    %2 = arith.cmpi ne, %1, %c0_i32_0 : i32
    scf.if %2 {
      %cst_390 = arith.constant 0.000000e+00 : f32
      %509 = vector.broadcast %cst_390 : f32 to vector<1x19x8x128xf32>
      %c0_391 = arith.constant 0 : index
      %c0_392 = arith.constant 0 : index
      %c0_393 = arith.constant 0 : index
      %c0_394 = arith.constant 0 : index
      %510 = vector.load %arg4[%c0_391, %c0_392, %c0_393, %c0_394] : memref<1x19x8x128xf32, #tpu.memory_space<vmem>>, vector<1x19x8x128xf32>
      tpu.vector_store %arg4[%c0_391, %c0_392, %c0_393, %c0_394], %509 {strides = array<i32>} : memref<1x19x8x128xf32, #tpu.memory_space<vmem>>, vector<1x19x8x128xf32>,
      %cst_395 = arith.constant 0.000000e+00 : f32
      %511 = vector.broadcast %cst_395 : f32 to vector<1x19x8x128xf32>
      %c0_396 = arith.constant 0 : index
      %c0_397 = arith.constant 0 : index
      %c0_398 = arith.constant 0 : index
      %c0_399 = arith.constant 0 : index
      %512 = vector.load %arg5[%c0_396, %c0_397, %c0_398, %c0_399] : memref<1x19x8x128xf32, #tpu.memory_space<vmem>>, vector<1x19x8x128xf32>
      tpu.vector_store %arg5[%c0_396, %c0_397, %c0_398, %c0_399], %511 {strides = array<i32>} : memref<1x19x8x128xf32, #tpu.memory_space<vmem>>, vector<1x19x8x128xf32>,
    } else {
    }
    %c0 = arith.constant 0 : index
    %c0_1 = arith.constant 0 : index
    %c0_2 = arith.constant 0 : index
    %c0_3 = arith.constant 0 : index
    %3 = vector.load %arg2[%c0, %c0_1, %c0_2, %c0_3] : memref<1x19x8x128xf32, #tpu.memory_space<vmem>>, vector<1x19x8x128xf32>
    %4 = vector.shape_cast %3 : vector<1x19x8x128xf32> to vector<19x8x128xf32>
    %c0_4 = arith.constant 0 : index
    %c0_5 = arith.constant 0 : index
    %c0_6 = arith.constant 0 : index
    %5 = vector.load %arg3[%c0_4, %c0_5, %c0_6] : memref<1x8x128xi32, #tpu.memory_space<vmem>>, vector<1x8x128xi32>
    %6 = vector.shape_cast %5 : vector<1x8x128xi32> to vector<8x128xi32>
    %cst = arith.constant dense<0xFF800000> : vector<8x128xf32>
    %7 = vector.multi_reduction <maximumf>, %4, %cst [0] : vector<19x8x128xf32> to vector<8x128xf32>
    %8 = vector.shape_cast %7 : vector<8x128xf32> to vector<1x8x128xf32>
    %9 = vector.broadcast %8 : vector<1x8x128xf32> to vector<19x8x128xf32>
    %10 = arith.subf %4, %9 : vector<19x8x128xf32>
    %11 = math.exp %10 : vector<19x8x128xf32>
    %cst_7 = arith.constant dense<0.000000e+00> : vector<8x128xf32>
    %12 = vector.multi_reduction <add>, %11, %cst_7 [0] : vector<19x8x128xf32> to vector<8x128xf32>
    %13 = math.log %12 : vector<8x128xf32>
    %14 = arith.addf %7, %13 : vector<8x128xf32>
    %c0_i32_8 = arith.constant 0 : i32
    %15 = vector.broadcast %c0_i32_8 : i32 to vector<8x128xi32>
    %16 = arith.cmpi eq, %6, %15 : vector<8x128xi32>
    %17 = vector.extract_strided_slice %4 {offsets = [0, 0, 0], sizes = [1, 8, 128], strides = [1, 1, 1]} : vector<19x8x128xf32> to vector<1x8x128xf32>
    %18 = vector.shape_cast %17 : vector<1x8x128xf32> to vector<8x128xf32>
    %19 = arith.subf %14, %18 : vector<8x128xf32>
    %cst_9 = arith.constant 0.000000e+00 : f32
    %20 = vector.broadcast %cst_9 : f32 to vector<8x128xf32>
    %21 = arith.select %16, %19, %20 : vector<8x128xi1>, vector<8x128xf32>
    %cst_10 = arith.constant 1.000000e+00 : f32
    %cst_11 = arith.constant 0.000000e+00 : f32
    %22 = vector.broadcast %cst_10 : f32 to vector<8x128xf32>
    %23 = vector.broadcast %cst_11 : f32 to vector<8x128xf32>
    %24 = arith.select %16, %22, %23 : vector<8x128xi1>, vector<8x128xf32>
    %c0_12 = arith.constant 0 : index
    %c0_13 = arith.constant 0 : index
    %c0_14 = arith.constant 0 : index
    %c0_15 = arith.constant 0 : index
    %25 = vector.load %arg4[%c0_12, %c0_13, %c0_14, %c0_15] : memref<1x19x8x128xf32, #tpu.memory_space<vmem>>, vector<1x1x8x128xf32>
    %26 = vector.shape_cast %25 : vector<1x1x8x128xf32> to vector<8x128xf32>
    %27 = vector.shape_cast %21 : vector<8x128xf32> to vector<1x8x128xf32>
    %cst_16 = arith.constant dense<0.000000e+00> : vector<8x128xf32>
    %28 = vector.multi_reduction <add>, %27, %cst_16 [0] : vector<1x8x128xf32> to vector<8x128xf32>
    %29 = arith.addf %26, %28 : vector<8x128xf32>
    %c0_17 = arith.constant 0 : index
    %c0_18 = arith.constant 0 : index
    %c0_19 = arith.constant 0 : index
    %c0_20 = arith.constant 0 : index
    %30 = vector.load %arg4[%c0_17, %c0_18, %c0_19, %c0_20] : memref<1x19x8x128xf32, #tpu.memory_space<vmem>>, vector<1x1x8x128xf32>
    %31 = vector.shape_cast %30 : vector<1x1x8x128xf32> to vector<8x128xf32>
    %32 = vector.shape_cast %29 : vector<8x128xf32> to vector<1x1x8x128xf32>
    tpu.vector_store %arg4[%c0_17, %c0_18, %c0_19, %c0_20], %32 {strides = array<i32>} : memref<1x19x8x128xf32, #tpu.memory_space<vmem>>, vector<1x1x8x128xf32>,
    %c0_21 = arith.constant 0 : index
    %c0_22 = arith.constant 0 : index
    %c0_23 = arith.constant 0 : index
    %c0_24 = arith.constant 0 : index
    %33 = vector.load %arg5[%c0_21, %c0_22, %c0_23, %c0_24] : memref<1x19x8x128xf32, #tpu.memory_space<vmem>>, vector<1x1x8x128xf32>
    %34 = vector.shape_cast %33 : vector<1x1x8x128xf32> to vector<8x128xf32>
    %35 = vector.shape_cast %24 : vector<8x128xf32> to vector<1x8x128xf32>
    %cst_25 = arith.constant dense<0.000000e+00> : vector<8x128xf32>
    %36 = vector.multi_reduction <add>, %35, %cst_25 [0] : vector<1x8x128xf32> to vector<8x128xf32>
    %37 = arith.addf %34, %36 : vector<8x128xf32>
    %c0_26 = arith.constant 0 : index
    %c0_27 = arith.constant 0 : index
    %c0_28 = arith.constant 0 : index
    %c0_29 = arith.constant 0 : index
    %38 = vector.load %arg5[%c0_26, %c0_27, %c0_28, %c0_29] : memref<1x19x8x128xf32, #tpu.memory_space<vmem>>, vector<1x1x8x128xf32>
    %39 = vector.shape_cast %38 : vector<1x1x8x128xf32> to vector<8x128xf32>
    %40 = vector.shape_cast %37 : vector<8x128xf32> to vector<1x1x8x128xf32>
    tpu.vector_store %arg5[%c0_26, %c0_27, %c0_28, %c0_29], %40 {strides = array<i32>} : memref<1x19x8x128xf32, #tpu.memory_space<vmem>>, vector<1x1x8x128xf32>,
    %c1_i32 = arith.constant 1 : i32
    %41 = vector.broadcast %c1_i32 : i32 to vector<8x128xi32>
    %42 = arith.cmpi eq, %6, %41 : vector<8x128xi32>
    %43 = vector.extract_strided_slice %4 {offsets = [1, 0, 0], sizes = [1, 8, 128], strides = [1, 1, 1]} : vector<19x8x128xf32> to vector<1x8x128xf32>
    %44 = vector.shape_cast %43 : vector<1x8x128xf32> to vector<8x128xf32>
    %45 = arith.subf %14, %44 : vector<8x128xf32>
    %cst_30 = arith.constant 0.000000e+00 : f32
    %46 = vector.broadcast %cst_30 : f32 to vector<8x128xf32>
    %47 = arith.select %42, %45, %46 : vector<8x128xi1>, vector<8x128xf32>
    %cst_31 = arith.constant 1.000000e+00 : f32
    %cst_32 = arith.constant 0.000000e+00 : f32
    %48 = vector.broadcast %cst_31 : f32 to vector<8x128xf32>
    %49 = vector.broadcast %cst_32 : f32 to vector<8x128xf32>
    %50 = arith.select %42, %48, %49 : vector<8x128xi1>, vector<8x128xf32>
    %c0_33 = arith.constant 0 : index
    %c1 = arith.constant 1 : index
    %c0_34 = arith.constant 0 : index
    %c0_35 = arith.constant 0 : index
    %51 = vector.load %arg4[%c0_33, %c1, %c0_34, %c0_35] : memref<1x19x8x128xf32, #tpu.memory_space<vmem>>, vector<1x1x8x128xf32>
    %52 = vector.shape_cast %51 : vector<1x1x8x128xf32> to vector<8x128xf32>
    %53 = vector.shape_cast %47 : vector<8x128xf32> to vector<1x8x128xf32>
    %cst_36 = arith.constant dense<0.000000e+00> : vector<8x128xf32>
    %54 = vector.multi_reduction <add>, %53, %cst_36 [0] : vector<1x8x128xf32> to vector<8x128xf32>
    %55 = arith.addf %52, %54 : vector<8x128xf32>
    %c0_37 = arith.constant 0 : index
    %c1_38 = arith.constant 1 : index
    %c0_39 = arith.constant 0 : index
    %c0_40 = arith.constant 0 : index
    %56 = vector.load %arg4[%c0_37, %c1_38, %c0_39, %c0_40] : memref<1x19x8x128xf32, #tpu.memory_space<vmem>>, vector<1x1x8x128xf32>
    %57 = vector.shape_cast %56 : vector<1x1x8x128xf32> to vector<8x128xf32>
    %58 = vector.shape_cast %55 : vector<8x128xf32> to vector<1x1x8x128xf32>
    tpu.vector_store %arg4[%c0_37, %c1_38, %c0_39, %c0_40], %58 {strides = array<i32>} : memref<1x19x8x128xf32, #tpu.memory_space<vmem>>, vector<1x1x8x128xf32>,
    %c0_41 = arith.constant 0 : index
    %c1_42 = arith.constant 1 : index
    %c0_43 = arith.constant 0 : index
    %c0_44 = arith.constant 0 : index
    %59 = vector.load %arg5[%c0_41, %c1_42, %c0_43, %c0_44] : memref<1x19x8x128xf32, #tpu.memory_space<vmem>>, vector<1x1x8x128xf32>
    %60 = vector.shape_cast %59 : vector<1x1x8x128xf32> to vector<8x128xf32>
    %61 = vector.shape_cast %50 : vector<8x128xf32> to vector<1x8x128xf32>
    %cst_45 = arith.constant dense<0.000000e+00> : vector<8x128xf32>
    %62 = vector.multi_reduction <add>, %61, %cst_45 [0] : vector<1x8x128xf32> to vector<8x128xf32>
    %63 = arith.addf %60, %62 : vector<8x128xf32>
    %c0_46 = arith.constant 0 : index
    %c1_47 = arith.constant 1 : index
    %c0_48 = arith.constant 0 : index
    %c0_49 = arith.constant 0 : index
    %64 = vector.load %arg5[%c0_46, %c1_47, %c0_48, %c0_49] : memref<1x19x8x128xf32, #tpu.memory_space<vmem>>, vector<1x1x8x128xf32>
    %65 = vector.shape_cast %64 : vector<1x1x8x128xf32> to vector<8x128xf32>
    %66 = vector.shape_cast %63 : vector<8x128xf32> to vector<1x1x8x128xf32>
    tpu.vector_store %arg5[%c0_46, %c1_47, %c0_48, %c0_49], %66 {strides = array<i32>} : memref<1x19x8x128xf32, #tpu.memory_space<vmem>>, vector<1x1x8x128xf32>,
    %c2_i32 = arith.constant 2 : i32
    %67 = vector.broadcast %c2_i32 : i32 to vector<8x128xi32>
    %68 = arith.cmpi eq, %6, %67 : vector<8x128xi32>
    %69 = vector.extract_strided_slice %4 {offsets = [2, 0, 0], sizes = [1, 8, 128], strides = [1, 1, 1]} : vector<19x8x128xf32> to vector<1x8x128xf32>
    %70 = vector.shape_cast %69 : vector<1x8x128xf32> to vector<8x128xf32>
    %71 = arith.subf %14, %70 : vector<8x128xf32>
    %cst_50 = arith.constant 0.000000e+00 : f32
    %72 = vector.broadcast %cst_50 : f32 to vector<8x128xf32>
    %73 = arith.select %68, %71, %72 : vector<8x128xi1>, vector<8x128xf32>
    %cst_51 = arith.constant 1.000000e+00 : f32
    %cst_52 = arith.constant 0.000000e+00 : f32
    %74 = vector.broadcast %cst_51 : f32 to vector<8x128xf32>
    %75 = vector.broadcast %cst_52 : f32 to vector<8x128xf32>
    %76 = arith.select %68, %74, %75 : vector<8x128xi1>, vector<8x128xf32>
    %c0_53 = arith.constant 0 : index
    %c2 = arith.constant 2 : index
    %c0_54 = arith.constant 0 : index
    %c0_55 = arith.constant 0 : index
    %77 = vector.load %arg4[%c0_53, %c2, %c0_54, %c0_55] : memref<1x19x8x128xf32, #tpu.memory_space<vmem>>, vector<1x1x8x128xf32>
    %78 = vector.shape_cast %77 : vector<1x1x8x128xf32> to vector<8x128xf32>
    %79 = vector.shape_cast %73 : vector<8x128xf32> to vector<1x8x128xf32>
    %cst_56 = arith.constant dense<0.000000e+00> : vector<8x128xf32>
    %80 = vector.multi_reduction <add>, %79, %cst_56 [0] : vector<1x8x128xf32> to vector<8x128xf32>
    %81 = arith.addf %78, %80 : vector<8x128xf32>
    %c0_57 = arith.constant 0 : index
    %c2_58 = arith.constant 2 : index
    %c0_59 = arith.constant 0 : index
    %c0_60 = arith.constant 0 : index
    %82 = vector.load %arg4[%c0_57, %c2_58, %c0_59, %c0_60] : memref<1x19x8x128xf32, #tpu.memory_space<vmem>>, vector<1x1x8x128xf32>
    %83 = vector.shape_cast %82 : vector<1x1x8x128xf32> to vector<8x128xf32>
    %84 = vector.shape_cast %81 : vector<8x128xf32> to vector<1x1x8x128xf32>
    tpu.vector_store %arg4[%c0_57, %c2_58, %c0_59, %c0_60], %84 {strides = array<i32>} : memref<1x19x8x128xf32, #tpu.memory_space<vmem>>, vector<1x1x8x128xf32>,
    %c0_61 = arith.constant 0 : index
    %c2_62 = arith.constant 2 : index
    %c0_63 = arith.constant 0 : index
    %c0_64 = arith.constant 0 : index
    %85 = vector.load %arg5[%c0_61, %c2_62, %c0_63, %c0_64] : memref<1x19x8x128xf32, #tpu.memory_space<vmem>>, vector<1x1x8x128xf32>
    %86 = vector.shape_cast %85 : vector<1x1x8x128xf32> to vector<8x128xf32>
    %87 = vector.shape_cast %76 : vector<8x128xf32> to vector<1x8x128xf32>
    %cst_65 = arith.constant dense<0.000000e+00> : vector<8x128xf32>
    %88 = vector.multi_reduction <add>, %87, %cst_65 [0] : vector<1x8x128xf32> to vector<8x128xf32>
    %89 = arith.addf %86, %88 : vector<8x128xf32>
    %c0_66 = arith.constant 0 : index
    %c2_67 = arith.constant 2 : index
    %c0_68 = arith.constant 0 : index
    %c0_69 = arith.constant 0 : index
    %90 = vector.load %arg5[%c0_66, %c2_67, %c0_68, %c0_69] : memref<1x19x8x128xf32, #tpu.memory_space<vmem>>, vector<1x1x8x128xf32>
    %91 = vector.shape_cast %90 : vector<1x1x8x128xf32> to vector<8x128xf32>
    %92 = vector.shape_cast %89 : vector<8x128xf32> to vector<1x1x8x128xf32>
    tpu.vector_store %arg5[%c0_66, %c2_67, %c0_68, %c0_69], %92 {strides = array<i32>} : memref<1x19x8x128xf32, #tpu.memory_space<vmem>>, vector<1x1x8x128xf32>,
    %c3_i32 = arith.constant 3 : i32
    %93 = vector.broadcast %c3_i32 : i32 to vector<8x128xi32>
    %94 = arith.cmpi eq, %6, %93 : vector<8x128xi32>
    %95 = vector.extract_strided_slice %4 {offsets = [3, 0, 0], sizes = [1, 8, 128], strides = [1, 1, 1]} : vector<19x8x128xf32> to vector<1x8x128xf32>
    %96 = vector.shape_cast %95 : vector<1x8x128xf32> to vector<8x128xf32>
    %97 = arith.subf %14, %96 : vector<8x128xf32>
    %cst_70 = arith.constant 0.000000e+00 : f32
    %98 = vector.broadcast %cst_70 : f32 to vector<8x128xf32>
    %99 = arith.select %94, %97, %98 : vector<8x128xi1>, vector<8x128xf32>
    %cst_71 = arith.constant 1.000000e+00 : f32
    %cst_72 = arith.constant 0.000000e+00 : f32
    %100 = vector.broadcast %cst_71 : f32 to vector<8x128xf32>
    %101 = vector.broadcast %cst_72 : f32 to vector<8x128xf32>
    %102 = arith.select %94, %100, %101 : vector<8x128xi1>, vector<8x128xf32>
    %c0_73 = arith.constant 0 : index
    %c3 = arith.constant 3 : index
    %c0_74 = arith.constant 0 : index
    %c0_75 = arith.constant 0 : index
    %103 = vector.load %arg4[%c0_73, %c3, %c0_74, %c0_75] : memref<1x19x8x128xf32, #tpu.memory_space<vmem>>, vector<1x1x8x128xf32>
    %104 = vector.shape_cast %103 : vector<1x1x8x128xf32> to vector<8x128xf32>
    %105 = vector.shape_cast %99 : vector<8x128xf32> to vector<1x8x128xf32>
    %cst_76 = arith.constant dense<0.000000e+00> : vector<8x128xf32>
    %106 = vector.multi_reduction <add>, %105, %cst_76 [0] : vector<1x8x128xf32> to vector<8x128xf32>
    %107 = arith.addf %104, %106 : vector<8x128xf32>
    %c0_77 = arith.constant 0 : index
    %c3_78 = arith.constant 3 : index
    %c0_79 = arith.constant 0 : index
    %c0_80 = arith.constant 0 : index
    %108 = vector.load %arg4[%c0_77, %c3_78, %c0_79, %c0_80] : memref<1x19x8x128xf32, #tpu.memory_space<vmem>>, vector<1x1x8x128xf32>
    %109 = vector.shape_cast %108 : vector<1x1x8x128xf32> to vector<8x128xf32>
    %110 = vector.shape_cast %107 : vector<8x128xf32> to vector<1x1x8x128xf32>
    tpu.vector_store %arg4[%c0_77, %c3_78, %c0_79, %c0_80], %110 {strides = array<i32>} : memref<1x19x8x128xf32, #tpu.memory_space<vmem>>, vector<1x1x8x128xf32>,
    %c0_81 = arith.constant 0 : index
    %c3_82 = arith.constant 3 : index
    %c0_83 = arith.constant 0 : index
    %c0_84 = arith.constant 0 : index
    %111 = vector.load %arg5[%c0_81, %c3_82, %c0_83, %c0_84] : memref<1x19x8x128xf32, #tpu.memory_space<vmem>>, vector<1x1x8x128xf32>
    %112 = vector.shape_cast %111 : vector<1x1x8x128xf32> to vector<8x128xf32>
    %113 = vector.shape_cast %102 : vector<8x128xf32> to vector<1x8x128xf32>
    %cst_85 = arith.constant dense<0.000000e+00> : vector<8x128xf32>
    %114 = vector.multi_reduction <add>, %113, %cst_85 [0] : vector<1x8x128xf32> to vector<8x128xf32>
    %115 = arith.addf %112, %114 : vector<8x128xf32>
    %c0_86 = arith.constant 0 : index
    %c3_87 = arith.constant 3 : index
    %c0_88 = arith.constant 0 : index
    %c0_89 = arith.constant 0 : index
    %116 = vector.load %arg5[%c0_86, %c3_87, %c0_88, %c0_89] : memref<1x19x8x128xf32, #tpu.memory_space<vmem>>, vector<1x1x8x128xf32>
    %117 = vector.shape_cast %116 : vector<1x1x8x128xf32> to vector<8x128xf32>
    %118 = vector.shape_cast %115 : vector<8x128xf32> to vector<1x1x8x128xf32>
    tpu.vector_store %arg5[%c0_86, %c3_87, %c0_88, %c0_89], %118 {strides = array<i32>} : memref<1x19x8x128xf32, #tpu.memory_space<vmem>>, vector<1x1x8x128xf32>,
    %c4_i32 = arith.constant 4 : i32
    %119 = vector.broadcast %c4_i32 : i32 to vector<8x128xi32>
    %120 = arith.cmpi eq, %6, %119 : vector<8x128xi32>
    %121 = vector.extract_strided_slice %4 {offsets = [4, 0, 0], sizes = [1, 8, 128], strides = [1, 1, 1]} : vector<19x8x128xf32> to vector<1x8x128xf32>
    %122 = vector.shape_cast %121 : vector<1x8x128xf32> to vector<8x128xf32>
    %123 = arith.subf %14, %122 : vector<8x128xf32>
    %cst_90 = arith.constant 0.000000e+00 : f32
    %124 = vector.broadcast %cst_90 : f32 to vector<8x128xf32>
    %125 = arith.select %120, %123, %124 : vector<8x128xi1>, vector<8x128xf32>
    %cst_91 = arith.constant 1.000000e+00 : f32
    %cst_92 = arith.constant 0.000000e+00 : f32
    %126 = vector.broadcast %cst_91 : f32 to vector<8x128xf32>
    %127 = vector.broadcast %cst_92 : f32 to vector<8x128xf32>
    %128 = arith.select %120, %126, %127 : vector<8x128xi1>, vector<8x128xf32>
    %c0_93 = arith.constant 0 : index
    %c4 = arith.constant 4 : index
    %c0_94 = arith.constant 0 : index
    %c0_95 = arith.constant 0 : index
    %129 = vector.load %arg4[%c0_93, %c4, %c0_94, %c0_95] : memref<1x19x8x128xf32, #tpu.memory_space<vmem>>, vector<1x1x8x128xf32>
    %130 = vector.shape_cast %129 : vector<1x1x8x128xf32> to vector<8x128xf32>
    %131 = vector.shape_cast %125 : vector<8x128xf32> to vector<1x8x128xf32>
    %cst_96 = arith.constant dense<0.000000e+00> : vector<8x128xf32>
    %132 = vector.multi_reduction <add>, %131, %cst_96 [0] : vector<1x8x128xf32> to vector<8x128xf32>
    %133 = arith.addf %130, %132 : vector<8x128xf32>
    %c0_97 = arith.constant 0 : index
    %c4_98 = arith.constant 4 : index
    %c0_99 = arith.constant 0 : index
    %c0_100 = arith.constant 0 : index
    %134 = vector.load %arg4[%c0_97, %c4_98, %c0_99, %c0_100] : memref<1x19x8x128xf32, #tpu.memory_space<vmem>>, vector<1x1x8x128xf32>
    %135 = vector.shape_cast %134 : vector<1x1x8x128xf32> to vector<8x128xf32>
    %136 = vector.shape_cast %133 : vector<8x128xf32> to vector<1x1x8x128xf32>
    tpu.vector_store %arg4[%c0_97, %c4_98, %c0_99, %c0_100], %136 {strides = array<i32>} : memref<1x19x8x128xf32, #tpu.memory_space<vmem>>, vector<1x1x8x128xf32>,
    %c0_101 = arith.constant 0 : index
    %c4_102 = arith.constant 4 : index
    %c0_103 = arith.constant 0 : index
    %c0_104 = arith.constant 0 : index
    %137 = vector.load %arg5[%c0_101, %c4_102, %c0_103, %c0_104] : memref<1x19x8x128xf32, #tpu.memory_space<vmem>>, vector<1x1x8x128xf32>
    %138 = vector.shape_cast %137 : vector<1x1x8x128xf32> to vector<8x128xf32>
    %139 = vector.shape_cast %128 : vector<8x128xf32> to vector<1x8x128xf32>
    %cst_105 = arith.constant dense<0.000000e+00> : vector<8x128xf32>
    %140 = vector.multi_reduction <add>, %139, %cst_105 [0] : vector<1x8x128xf32> to vector<8x128xf32>
    %141 = arith.addf %138, %140 : vector<8x128xf32>
    %c0_106 = arith.constant 0 : index
    %c4_107 = arith.constant 4 : index
    %c0_108 = arith.constant 0 : index
    %c0_109 = arith.constant 0 : index
    %142 = vector.load %arg5[%c0_106, %c4_107, %c0_108, %c0_109] : memref<1x19x8x128xf32, #tpu.memory_space<vmem>>, vector<1x1x8x128xf32>
    %143 = vector.shape_cast %142 : vector<1x1x8x128xf32> to vector<8x128xf32>
    %144 = vector.shape_cast %141 : vector<8x128xf32> to vector<1x1x8x128xf32>
    tpu.vector_store %arg5[%c0_106, %c4_107, %c0_108, %c0_109], %144 {strides = array<i32>} : memref<1x19x8x128xf32, #tpu.memory_space<vmem>>, vector<1x1x8x128xf32>,
    %c5_i32 = arith.constant 5 : i32
    %145 = vector.broadcast %c5_i32 : i32 to vector<8x128xi32>
    %146 = arith.cmpi eq, %6, %145 : vector<8x128xi32>
    %147 = vector.extract_strided_slice %4 {offsets = [5, 0, 0], sizes = [1, 8, 128], strides = [1, 1, 1]} : vector<19x8x128xf32> to vector<1x8x128xf32>
    %148 = vector.shape_cast %147 : vector<1x8x128xf32> to vector<8x128xf32>
    %149 = arith.subf %14, %148 : vector<8x128xf32>
    %cst_110 = arith.constant 0.000000e+00 : f32
    %150 = vector.broadcast %cst_110 : f32 to vector<8x128xf32>
    %151 = arith.select %146, %149, %150 : vector<8x128xi1>, vector<8x128xf32>
    %cst_111 = arith.constant 1.000000e+00 : f32
    %cst_112 = arith.constant 0.000000e+00 : f32
    %152 = vector.broadcast %cst_111 : f32 to vector<8x128xf32>
    %153 = vector.broadcast %cst_112 : f32 to vector<8x128xf32>
    %154 = arith.select %146, %152, %153 : vector<8x128xi1>, vector<8x128xf32>
    %c0_113 = arith.constant 0 : index
    %c5 = arith.constant 5 : index
    %c0_114 = arith.constant 0 : index
    %c0_115 = arith.constant 0 : index
    %155 = vector.load %arg4[%c0_113, %c5, %c0_114, %c0_115] : memref<1x19x8x128xf32, #tpu.memory_space<vmem>>, vector<1x1x8x128xf32>
    %156 = vector.shape_cast %155 : vector<1x1x8x128xf32> to vector<8x128xf32>
    %157 = vector.shape_cast %151 : vector<8x128xf32> to vector<1x8x128xf32>
    %cst_116 = arith.constant dense<0.000000e+00> : vector<8x128xf32>
    %158 = vector.multi_reduction <add>, %157, %cst_116 [0] : vector<1x8x128xf32> to vector<8x128xf32>
    %159 = arith.addf %156, %158 : vector<8x128xf32>
    %c0_117 = arith.constant 0 : index
    %c5_118 = arith.constant 5 : index
    %c0_119 = arith.constant 0 : index
    %c0_120 = arith.constant 0 : index
    %160 = vector.load %arg4[%c0_117, %c5_118, %c0_119, %c0_120] : memref<1x19x8x128xf32, #tpu.memory_space<vmem>>, vector<1x1x8x128xf32>
    %161 = vector.shape_cast %160 : vector<1x1x8x128xf32> to vector<8x128xf32>
    %162 = vector.shape_cast %159 : vector<8x128xf32> to vector<1x1x8x128xf32>
    tpu.vector_store %arg4[%c0_117, %c5_118, %c0_119, %c0_120], %162 {strides = array<i32>} : memref<1x19x8x128xf32, #tpu.memory_space<vmem>>, vector<1x1x8x128xf32>,
    %c0_121 = arith.constant 0 : index
    %c5_122 = arith.constant 5 : index
    %c0_123 = arith.constant 0 : index
    %c0_124 = arith.constant 0 : index
    %163 = vector.load %arg5[%c0_121, %c5_122, %c0_123, %c0_124] : memref<1x19x8x128xf32, #tpu.memory_space<vmem>>, vector<1x1x8x128xf32>
    %164 = vector.shape_cast %163 : vector<1x1x8x128xf32> to vector<8x128xf32>
    %165 = vector.shape_cast %154 : vector<8x128xf32> to vector<1x8x128xf32>
    %cst_125 = arith.constant dense<0.000000e+00> : vector<8x128xf32>
    %166 = vector.multi_reduction <add>, %165, %cst_125 [0] : vector<1x8x128xf32> to vector<8x128xf32>
    %167 = arith.addf %164, %166 : vector<8x128xf32>
    %c0_126 = arith.constant 0 : index
    %c5_127 = arith.constant 5 : index
    %c0_128 = arith.constant 0 : index
    %c0_129 = arith.constant 0 : index
    %168 = vector.load %arg5[%c0_126, %c5_127, %c0_128, %c0_129] : memref<1x19x8x128xf32, #tpu.memory_space<vmem>>, vector<1x1x8x128xf32>
    %169 = vector.shape_cast %168 : vector<1x1x8x128xf32> to vector<8x128xf32>
    %170 = vector.shape_cast %167 : vector<8x128xf32> to vector<1x1x8x128xf32>
    tpu.vector_store %arg5[%c0_126, %c5_127, %c0_128, %c0_129], %170 {strides = array<i32>} : memref<1x19x8x128xf32, #tpu.memory_space<vmem>>, vector<1x1x8x128xf32>,
    %c6_i32 = arith.constant 6 : i32
    %171 = vector.broadcast %c6_i32 : i32 to vector<8x128xi32>
    %172 = arith.cmpi eq, %6, %171 : vector<8x128xi32>
    %173 = vector.extract_strided_slice %4 {offsets = [6, 0, 0], sizes = [1, 8, 128], strides = [1, 1, 1]} : vector<19x8x128xf32> to vector<1x8x128xf32>
    %174 = vector.shape_cast %173 : vector<1x8x128xf32> to vector<8x128xf32>
    %175 = arith.subf %14, %174 : vector<8x128xf32>
    %cst_130 = arith.constant 0.000000e+00 : f32
    %176 = vector.broadcast %cst_130 : f32 to vector<8x128xf32>
    %177 = arith.select %172, %175, %176 : vector<8x128xi1>, vector<8x128xf32>
    %cst_131 = arith.constant 1.000000e+00 : f32
    %cst_132 = arith.constant 0.000000e+00 : f32
    %178 = vector.broadcast %cst_131 : f32 to vector<8x128xf32>
    %179 = vector.broadcast %cst_132 : f32 to vector<8x128xf32>
    %180 = arith.select %172, %178, %179 : vector<8x128xi1>, vector<8x128xf32>
    %c0_133 = arith.constant 0 : index
    %c6 = arith.constant 6 : index
    %c0_134 = arith.constant 0 : index
    %c0_135 = arith.constant 0 : index
    %181 = vector.load %arg4[%c0_133, %c6, %c0_134, %c0_135] : memref<1x19x8x128xf32, #tpu.memory_space<vmem>>, vector<1x1x8x128xf32>
    %182 = vector.shape_cast %181 : vector<1x1x8x128xf32> to vector<8x128xf32>
    %183 = vector.shape_cast %177 : vector<8x128xf32> to vector<1x8x128xf32>
    %cst_136 = arith.constant dense<0.000000e+00> : vector<8x128xf32>
    %184 = vector.multi_reduction <add>, %183, %cst_136 [0] : vector<1x8x128xf32> to vector<8x128xf32>
    %185 = arith.addf %182, %184 : vector<8x128xf32>
    %c0_137 = arith.constant 0 : index
    %c6_138 = arith.constant 6 : index
    %c0_139 = arith.constant 0 : index
    %c0_140 = arith.constant 0 : index
    %186 = vector.load %arg4[%c0_137, %c6_138, %c0_139, %c0_140] : memref<1x19x8x128xf32, #tpu.memory_space<vmem>>, vector<1x1x8x128xf32>
    %187 = vector.shape_cast %186 : vector<1x1x8x128xf32> to vector<8x128xf32>
    %188 = vector.shape_cast %185 : vector<8x128xf32> to vector<1x1x8x128xf32>
    tpu.vector_store %arg4[%c0_137, %c6_138, %c0_139, %c0_140], %188 {strides = array<i32>} : memref<1x19x8x128xf32, #tpu.memory_space<vmem>>, vector<1x1x8x128xf32>,
    %c0_141 = arith.constant 0 : index
    %c6_142 = arith.constant 6 : index
    %c0_143 = arith.constant 0 : index
    %c0_144 = arith.constant 0 : index
    %189 = vector.load %arg5[%c0_141, %c6_142, %c0_143, %c0_144] : memref<1x19x8x128xf32, #tpu.memory_space<vmem>>, vector<1x1x8x128xf32>
    %190 = vector.shape_cast %189 : vector<1x1x8x128xf32> to vector<8x128xf32>
    %191 = vector.shape_cast %180 : vector<8x128xf32> to vector<1x8x128xf32>
    %cst_145 = arith.constant dense<0.000000e+00> : vector<8x128xf32>
    %192 = vector.multi_reduction <add>, %191, %cst_145 [0] : vector<1x8x128xf32> to vector<8x128xf32>
    %193 = arith.addf %190, %192 : vector<8x128xf32>
    %c0_146 = arith.constant 0 : index
    %c6_147 = arith.constant 6 : index
    %c0_148 = arith.constant 0 : index
    %c0_149 = arith.constant 0 : index
    %194 = vector.load %arg5[%c0_146, %c6_147, %c0_148, %c0_149] : memref<1x19x8x128xf32, #tpu.memory_space<vmem>>, vector<1x1x8x128xf32>
    %195 = vector.shape_cast %194 : vector<1x1x8x128xf32> to vector<8x128xf32>
    %196 = vector.shape_cast %193 : vector<8x128xf32> to vector<1x1x8x128xf32>
    tpu.vector_store %arg5[%c0_146, %c6_147, %c0_148, %c0_149], %196 {strides = array<i32>} : memref<1x19x8x128xf32, #tpu.memory_space<vmem>>, vector<1x1x8x128xf32>,
    %c7_i32 = arith.constant 7 : i32
    %197 = vector.broadcast %c7_i32 : i32 to vector<8x128xi32>
    %198 = arith.cmpi eq, %6, %197 : vector<8x128xi32>
    %199 = vector.extract_strided_slice %4 {offsets = [7, 0, 0], sizes = [1, 8, 128], strides = [1, 1, 1]} : vector<19x8x128xf32> to vector<1x8x128xf32>
    %200 = vector.shape_cast %199 : vector<1x8x128xf32> to vector<8x128xf32>
    %201 = arith.subf %14, %200 : vector<8x128xf32>
    %cst_150 = arith.constant 0.000000e+00 : f32
    %202 = vector.broadcast %cst_150 : f32 to vector<8x128xf32>
    %203 = arith.select %198, %201, %202 : vector<8x128xi1>, vector<8x128xf32>
    %cst_151 = arith.constant 1.000000e+00 : f32
    %cst_152 = arith.constant 0.000000e+00 : f32
    %204 = vector.broadcast %cst_151 : f32 to vector<8x128xf32>
    %205 = vector.broadcast %cst_152 : f32 to vector<8x128xf32>
    %206 = arith.select %198, %204, %205 : vector<8x128xi1>, vector<8x128xf32>
    %c0_153 = arith.constant 0 : index
    %c7 = arith.constant 7 : index
    %c0_154 = arith.constant 0 : index
    %c0_155 = arith.constant 0 : index
    %207 = vector.load %arg4[%c0_153, %c7, %c0_154, %c0_155] : memref<1x19x8x128xf32, #tpu.memory_space<vmem>>, vector<1x1x8x128xf32>
    %208 = vector.shape_cast %207 : vector<1x1x8x128xf32> to vector<8x128xf32>
    %209 = vector.shape_cast %203 : vector<8x128xf32> to vector<1x8x128xf32>
    %cst_156 = arith.constant dense<0.000000e+00> : vector<8x128xf32>
    %210 = vector.multi_reduction <add>, %209, %cst_156 [0] : vector<1x8x128xf32> to vector<8x128xf32>
    %211 = arith.addf %208, %210 : vector<8x128xf32>
    %c0_157 = arith.constant 0 : index
    %c7_158 = arith.constant 7 : index
    %c0_159 = arith.constant 0 : index
    %c0_160 = arith.constant 0 : index
    %212 = vector.load %arg4[%c0_157, %c7_158, %c0_159, %c0_160] : memref<1x19x8x128xf32, #tpu.memory_space<vmem>>, vector<1x1x8x128xf32>
    %213 = vector.shape_cast %212 : vector<1x1x8x128xf32> to vector<8x128xf32>
    %214 = vector.shape_cast %211 : vector<8x128xf32> to vector<1x1x8x128xf32>
    tpu.vector_store %arg4[%c0_157, %c7_158, %c0_159, %c0_160], %214 {strides = array<i32>} : memref<1x19x8x128xf32, #tpu.memory_space<vmem>>, vector<1x1x8x128xf32>,
    %c0_161 = arith.constant 0 : index
    %c7_162 = arith.constant 7 : index
    %c0_163 = arith.constant 0 : index
    %c0_164 = arith.constant 0 : index
    %215 = vector.load %arg5[%c0_161, %c7_162, %c0_163, %c0_164] : memref<1x19x8x128xf32, #tpu.memory_space<vmem>>, vector<1x1x8x128xf32>
    %216 = vector.shape_cast %215 : vector<1x1x8x128xf32> to vector<8x128xf32>
    %217 = vector.shape_cast %206 : vector<8x128xf32> to vector<1x8x128xf32>
    %cst_165 = arith.constant dense<0.000000e+00> : vector<8x128xf32>
    %218 = vector.multi_reduction <add>, %217, %cst_165 [0] : vector<1x8x128xf32> to vector<8x128xf32>
    %219 = arith.addf %216, %218 : vector<8x128xf32>
    %c0_166 = arith.constant 0 : index
    %c7_167 = arith.constant 7 : index
    %c0_168 = arith.constant 0 : index
    %c0_169 = arith.constant 0 : index
    %220 = vector.load %arg5[%c0_166, %c7_167, %c0_168, %c0_169] : memref<1x19x8x128xf32, #tpu.memory_space<vmem>>, vector<1x1x8x128xf32>
    %221 = vector.shape_cast %220 : vector<1x1x8x128xf32> to vector<8x128xf32>
    %222 = vector.shape_cast %219 : vector<8x128xf32> to vector<1x1x8x128xf32>
    tpu.vector_store %arg5[%c0_166, %c7_167, %c0_168, %c0_169], %222 {strides = array<i32>} : memref<1x19x8x128xf32, #tpu.memory_space<vmem>>, vector<1x1x8x128xf32>,
    %c8_i32 = arith.constant 8 : i32
    %223 = vector.broadcast %c8_i32 : i32 to vector<8x128xi32>
    %224 = arith.cmpi eq, %6, %223 : vector<8x128xi32>
    %225 = vector.extract_strided_slice %4 {offsets = [8, 0, 0], sizes = [1, 8, 128], strides = [1, 1, 1]} : vector<19x8x128xf32> to vector<1x8x128xf32>
    %226 = vector.shape_cast %225 : vector<1x8x128xf32> to vector<8x128xf32>
    %227 = arith.subf %14, %226 : vector<8x128xf32>
    %cst_170 = arith.constant 0.000000e+00 : f32
    %228 = vector.broadcast %cst_170 : f32 to vector<8x128xf32>
    %229 = arith.select %224, %227, %228 : vector<8x128xi1>, vector<8x128xf32>
    %cst_171 = arith.constant 1.000000e+00 : f32
    %cst_172 = arith.constant 0.000000e+00 : f32
    %230 = vector.broadcast %cst_171 : f32 to vector<8x128xf32>
    %231 = vector.broadcast %cst_172 : f32 to vector<8x128xf32>
    %232 = arith.select %224, %230, %231 : vector<8x128xi1>, vector<8x128xf32>
    %c0_173 = arith.constant 0 : index
    %c8 = arith.constant 8 : index
    %c0_174 = arith.constant 0 : index
    %c0_175 = arith.constant 0 : index
    %233 = vector.load %arg4[%c0_173, %c8, %c0_174, %c0_175] : memref<1x19x8x128xf32, #tpu.memory_space<vmem>>, vector<1x1x8x128xf32>
    %234 = vector.shape_cast %233 : vector<1x1x8x128xf32> to vector<8x128xf32>
    %235 = vector.shape_cast %229 : vector<8x128xf32> to vector<1x8x128xf32>
    %cst_176 = arith.constant dense<0.000000e+00> : vector<8x128xf32>
    %236 = vector.multi_reduction <add>, %235, %cst_176 [0] : vector<1x8x128xf32> to vector<8x128xf32>
    %237 = arith.addf %234, %236 : vector<8x128xf32>
    %c0_177 = arith.constant 0 : index
    %c8_178 = arith.constant 8 : index
    %c0_179 = arith.constant 0 : index
    %c0_180 = arith.constant 0 : index
    %238 = vector.load %arg4[%c0_177, %c8_178, %c0_179, %c0_180] : memref<1x19x8x128xf32, #tpu.memory_space<vmem>>, vector<1x1x8x128xf32>
    %239 = vector.shape_cast %238 : vector<1x1x8x128xf32> to vector<8x128xf32>
    %240 = vector.shape_cast %237 : vector<8x128xf32> to vector<1x1x8x128xf32>
    tpu.vector_store %arg4[%c0_177, %c8_178, %c0_179, %c0_180], %240 {strides = array<i32>} : memref<1x19x8x128xf32, #tpu.memory_space<vmem>>, vector<1x1x8x128xf32>,
    %c0_181 = arith.constant 0 : index
    %c8_182 = arith.constant 8 : index
    %c0_183 = arith.constant 0 : index
    %c0_184 = arith.constant 0 : index
    %241 = vector.load %arg5[%c0_181, %c8_182, %c0_183, %c0_184] : memref<1x19x8x128xf32, #tpu.memory_space<vmem>>, vector<1x1x8x128xf32>
    %242 = vector.shape_cast %241 : vector<1x1x8x128xf32> to vector<8x128xf32>
    %243 = vector.shape_cast %232 : vector<8x128xf32> to vector<1x8x128xf32>
    %cst_185 = arith.constant dense<0.000000e+00> : vector<8x128xf32>
    %244 = vector.multi_reduction <add>, %243, %cst_185 [0] : vector<1x8x128xf32> to vector<8x128xf32>
    %245 = arith.addf %242, %244 : vector<8x128xf32>
    %c0_186 = arith.constant 0 : index
    %c8_187 = arith.constant 8 : index
    %c0_188 = arith.constant 0 : index
    %c0_189 = arith.constant 0 : index
    %246 = vector.load %arg5[%c0_186, %c8_187, %c0_188, %c0_189] : memref<1x19x8x128xf32, #tpu.memory_space<vmem>>, vector<1x1x8x128xf32>
    %247 = vector.shape_cast %246 : vector<1x1x8x128xf32> to vector<8x128xf32>
    %248 = vector.shape_cast %245 : vector<8x128xf32> to vector<1x1x8x128xf32>
    tpu.vector_store %arg5[%c0_186, %c8_187, %c0_188, %c0_189], %248 {strides = array<i32>} : memref<1x19x8x128xf32, #tpu.memory_space<vmem>>, vector<1x1x8x128xf32>,
    %c9_i32 = arith.constant 9 : i32
    %249 = vector.broadcast %c9_i32 : i32 to vector<8x128xi32>
    %250 = arith.cmpi eq, %6, %249 : vector<8x128xi32>
    %251 = vector.extract_strided_slice %4 {offsets = [9, 0, 0], sizes = [1, 8, 128], strides = [1, 1, 1]} : vector<19x8x128xf32> to vector<1x8x128xf32>
    %252 = vector.shape_cast %251 : vector<1x8x128xf32> to vector<8x128xf32>
    %253 = arith.subf %14, %252 : vector<8x128xf32>
    %cst_190 = arith.constant 0.000000e+00 : f32
    %254 = vector.broadcast %cst_190 : f32 to vector<8x128xf32>
    %255 = arith.select %250, %253, %254 : vector<8x128xi1>, vector<8x128xf32>
    %cst_191 = arith.constant 1.000000e+00 : f32
    %cst_192 = arith.constant 0.000000e+00 : f32
    %256 = vector.broadcast %cst_191 : f32 to vector<8x128xf32>
    %257 = vector.broadcast %cst_192 : f32 to vector<8x128xf32>
    %258 = arith.select %250, %256, %257 : vector<8x128xi1>, vector<8x128xf32>
    %c0_193 = arith.constant 0 : index
    %c9 = arith.constant 9 : index
    %c0_194 = arith.constant 0 : index
    %c0_195 = arith.constant 0 : index
    %259 = vector.load %arg4[%c0_193, %c9, %c0_194, %c0_195] : memref<1x19x8x128xf32, #tpu.memory_space<vmem>>, vector<1x1x8x128xf32>
    %260 = vector.shape_cast %259 : vector<1x1x8x128xf32> to vector<8x128xf32>
    %261 = vector.shape_cast %255 : vector<8x128xf32> to vector<1x8x128xf32>
    %cst_196 = arith.constant dense<0.000000e+00> : vector<8x128xf32>
    %262 = vector.multi_reduction <add>, %261, %cst_196 [0] : vector<1x8x128xf32> to vector<8x128xf32>
    %263 = arith.addf %260, %262 : vector<8x128xf32>
    %c0_197 = arith.constant 0 : index
    %c9_198 = arith.constant 9 : index
    %c0_199 = arith.constant 0 : index
    %c0_200 = arith.constant 0 : index
    %264 = vector.load %arg4[%c0_197, %c9_198, %c0_199, %c0_200] : memref<1x19x8x128xf32, #tpu.memory_space<vmem>>, vector<1x1x8x128xf32>
    %265 = vector.shape_cast %264 : vector<1x1x8x128xf32> to vector<8x128xf32>
    %266 = vector.shape_cast %263 : vector<8x128xf32> to vector<1x1x8x128xf32>
    tpu.vector_store %arg4[%c0_197, %c9_198, %c0_199, %c0_200], %266 {strides = array<i32>} : memref<1x19x8x128xf32, #tpu.memory_space<vmem>>, vector<1x1x8x128xf32>,
    %c0_201 = arith.constant 0 : index
    %c9_202 = arith.constant 9 : index
    %c0_203 = arith.constant 0 : index
    %c0_204 = arith.constant 0 : index
    %267 = vector.load %arg5[%c0_201, %c9_202, %c0_203, %c0_204] : memref<1x19x8x128xf32, #tpu.memory_space<vmem>>, vector<1x1x8x128xf32>
    %268 = vector.shape_cast %267 : vector<1x1x8x128xf32> to vector<8x128xf32>
    %269 = vector.shape_cast %258 : vector<8x128xf32> to vector<1x8x128xf32>
    %cst_205 = arith.constant dense<0.000000e+00> : vector<8x128xf32>
    %270 = vector.multi_reduction <add>, %269, %cst_205 [0] : vector<1x8x128xf32> to vector<8x128xf32>
    %271 = arith.addf %268, %270 : vector<8x128xf32>
    %c0_206 = arith.constant 0 : index
    %c9_207 = arith.constant 9 : index
    %c0_208 = arith.constant 0 : index
    %c0_209 = arith.constant 0 : index
    %272 = vector.load %arg5[%c0_206, %c9_207, %c0_208, %c0_209] : memref<1x19x8x128xf32, #tpu.memory_space<vmem>>, vector<1x1x8x128xf32>
    %273 = vector.shape_cast %272 : vector<1x1x8x128xf32> to vector<8x128xf32>
    %274 = vector.shape_cast %271 : vector<8x128xf32> to vector<1x1x8x128xf32>
    tpu.vector_store %arg5[%c0_206, %c9_207, %c0_208, %c0_209], %274 {strides = array<i32>} : memref<1x19x8x128xf32, #tpu.memory_space<vmem>>, vector<1x1x8x128xf32>,
    %c10_i32 = arith.constant 10 : i32
    %275 = vector.broadcast %c10_i32 : i32 to vector<8x128xi32>
    %276 = arith.cmpi eq, %6, %275 : vector<8x128xi32>
    %277 = vector.extract_strided_slice %4 {offsets = [10, 0, 0], sizes = [1, 8, 128], strides = [1, 1, 1]} : vector<19x8x128xf32> to vector<1x8x128xf32>
    %278 = vector.shape_cast %277 : vector<1x8x128xf32> to vector<8x128xf32>
    %279 = arith.subf %14, %278 : vector<8x128xf32>
    %cst_210 = arith.constant 0.000000e+00 : f32
    %280 = vector.broadcast %cst_210 : f32 to vector<8x128xf32>
    %281 = arith.select %276, %279, %280 : vector<8x128xi1>, vector<8x128xf32>
    %cst_211 = arith.constant 1.000000e+00 : f32
    %cst_212 = arith.constant 0.000000e+00 : f32
    %282 = vector.broadcast %cst_211 : f32 to vector<8x128xf32>
    %283 = vector.broadcast %cst_212 : f32 to vector<8x128xf32>
    %284 = arith.select %276, %282, %283 : vector<8x128xi1>, vector<8x128xf32>
    %c0_213 = arith.constant 0 : index
    %c10 = arith.constant 10 : index
    %c0_214 = arith.constant 0 : index
    %c0_215 = arith.constant 0 : index
    %285 = vector.load %arg4[%c0_213, %c10, %c0_214, %c0_215] : memref<1x19x8x128xf32, #tpu.memory_space<vmem>>, vector<1x1x8x128xf32>
    %286 = vector.shape_cast %285 : vector<1x1x8x128xf32> to vector<8x128xf32>
    %287 = vector.shape_cast %281 : vector<8x128xf32> to vector<1x8x128xf32>
    %cst_216 = arith.constant dense<0.000000e+00> : vector<8x128xf32>
    %288 = vector.multi_reduction <add>, %287, %cst_216 [0] : vector<1x8x128xf32> to vector<8x128xf32>
    %289 = arith.addf %286, %288 : vector<8x128xf32>
    %c0_217 = arith.constant 0 : index
    %c10_218 = arith.constant 10 : index
    %c0_219 = arith.constant 0 : index
    %c0_220 = arith.constant 0 : index
    %290 = vector.load %arg4[%c0_217, %c10_218, %c0_219, %c0_220] : memref<1x19x8x128xf32, #tpu.memory_space<vmem>>, vector<1x1x8x128xf32>
    %291 = vector.shape_cast %290 : vector<1x1x8x128xf32> to vector<8x128xf32>
    %292 = vector.shape_cast %289 : vector<8x128xf32> to vector<1x1x8x128xf32>
    tpu.vector_store %arg4[%c0_217, %c10_218, %c0_219, %c0_220], %292 {strides = array<i32>} : memref<1x19x8x128xf32, #tpu.memory_space<vmem>>, vector<1x1x8x128xf32>,
    %c0_221 = arith.constant 0 : index
    %c10_222 = arith.constant 10 : index
    %c0_223 = arith.constant 0 : index
    %c0_224 = arith.constant 0 : index
    %293 = vector.load %arg5[%c0_221, %c10_222, %c0_223, %c0_224] : memref<1x19x8x128xf32, #tpu.memory_space<vmem>>, vector<1x1x8x128xf32>
    %294 = vector.shape_cast %293 : vector<1x1x8x128xf32> to vector<8x128xf32>
    %295 = vector.shape_cast %284 : vector<8x128xf32> to vector<1x8x128xf32>
    %cst_225 = arith.constant dense<0.000000e+00> : vector<8x128xf32>
    %296 = vector.multi_reduction <add>, %295, %cst_225 [0] : vector<1x8x128xf32> to vector<8x128xf32>
    %297 = arith.addf %294, %296 : vector<8x128xf32>
    %c0_226 = arith.constant 0 : index
    %c10_227 = arith.constant 10 : index
    %c0_228 = arith.constant 0 : index
    %c0_229 = arith.constant 0 : index
    %298 = vector.load %arg5[%c0_226, %c10_227, %c0_228, %c0_229] : memref<1x19x8x128xf32, #tpu.memory_space<vmem>>, vector<1x1x8x128xf32>
    %299 = vector.shape_cast %298 : vector<1x1x8x128xf32> to vector<8x128xf32>
    %300 = vector.shape_cast %297 : vector<8x128xf32> to vector<1x1x8x128xf32>
    tpu.vector_store %arg5[%c0_226, %c10_227, %c0_228, %c0_229], %300 {strides = array<i32>} : memref<1x19x8x128xf32, #tpu.memory_space<vmem>>, vector<1x1x8x128xf32>,
    %c11_i32 = arith.constant 11 : i32
    %301 = vector.broadcast %c11_i32 : i32 to vector<8x128xi32>
    %302 = arith.cmpi eq, %6, %301 : vector<8x128xi32>
    %303 = vector.extract_strided_slice %4 {offsets = [11, 0, 0], sizes = [1, 8, 128], strides = [1, 1, 1]} : vector<19x8x128xf32> to vector<1x8x128xf32>
    %304 = vector.shape_cast %303 : vector<1x8x128xf32> to vector<8x128xf32>
    %305 = arith.subf %14, %304 : vector<8x128xf32>
    %cst_230 = arith.constant 0.000000e+00 : f32
    %306 = vector.broadcast %cst_230 : f32 to vector<8x128xf32>
    %307 = arith.select %302, %305, %306 : vector<8x128xi1>, vector<8x128xf32>
    %cst_231 = arith.constant 1.000000e+00 : f32
    %cst_232 = arith.constant 0.000000e+00 : f32
    %308 = vector.broadcast %cst_231 : f32 to vector<8x128xf32>
    %309 = vector.broadcast %cst_232 : f32 to vector<8x128xf32>
    %310 = arith.select %302, %308, %309 : vector<8x128xi1>, vector<8x128xf32>
    %c0_233 = arith.constant 0 : index
    %c11 = arith.constant 11 : index
    %c0_234 = arith.constant 0 : index
    %c0_235 = arith.constant 0 : index
    %311 = vector.load %arg4[%c0_233, %c11, %c0_234, %c0_235] : memref<1x19x8x128xf32, #tpu.memory_space<vmem>>, vector<1x1x8x128xf32>
    %312 = vector.shape_cast %311 : vector<1x1x8x128xf32> to vector<8x128xf32>
    %313 = vector.shape_cast %307 : vector<8x128xf32> to vector<1x8x128xf32>
    %cst_236 = arith.constant dense<0.000000e+00> : vector<8x128xf32>
    %314 = vector.multi_reduction <add>, %313, %cst_236 [0] : vector<1x8x128xf32> to vector<8x128xf32>
    %315 = arith.addf %312, %314 : vector<8x128xf32>
    %c0_237 = arith.constant 0 : index
    %c11_238 = arith.constant 11 : index
    %c0_239 = arith.constant 0 : index
    %c0_240 = arith.constant 0 : index
    %316 = vector.load %arg4[%c0_237, %c11_238, %c0_239, %c0_240] : memref<1x19x8x128xf32, #tpu.memory_space<vmem>>, vector<1x1x8x128xf32>
    %317 = vector.shape_cast %316 : vector<1x1x8x128xf32> to vector<8x128xf32>
    %318 = vector.shape_cast %315 : vector<8x128xf32> to vector<1x1x8x128xf32>
    tpu.vector_store %arg4[%c0_237, %c11_238, %c0_239, %c0_240], %318 {strides = array<i32>} : memref<1x19x8x128xf32, #tpu.memory_space<vmem>>, vector<1x1x8x128xf32>,
    %c0_241 = arith.constant 0 : index
    %c11_242 = arith.constant 11 : index
    %c0_243 = arith.constant 0 : index
    %c0_244 = arith.constant 0 : index
    %319 = vector.load %arg5[%c0_241, %c11_242, %c0_243, %c0_244] : memref<1x19x8x128xf32, #tpu.memory_space<vmem>>, vector<1x1x8x128xf32>
    %320 = vector.shape_cast %319 : vector<1x1x8x128xf32> to vector<8x128xf32>
    %321 = vector.shape_cast %310 : vector<8x128xf32> to vector<1x8x128xf32>
    %cst_245 = arith.constant dense<0.000000e+00> : vector<8x128xf32>
    %322 = vector.multi_reduction <add>, %321, %cst_245 [0] : vector<1x8x128xf32> to vector<8x128xf32>
    %323 = arith.addf %320, %322 : vector<8x128xf32>
    %c0_246 = arith.constant 0 : index
    %c11_247 = arith.constant 11 : index
    %c0_248 = arith.constant 0 : index
    %c0_249 = arith.constant 0 : index
    %324 = vector.load %arg5[%c0_246, %c11_247, %c0_248, %c0_249] : memref<1x19x8x128xf32, #tpu.memory_space<vmem>>, vector<1x1x8x128xf32>
    %325 = vector.shape_cast %324 : vector<1x1x8x128xf32> to vector<8x128xf32>
    %326 = vector.shape_cast %323 : vector<8x128xf32> to vector<1x1x8x128xf32>
    tpu.vector_store %arg5[%c0_246, %c11_247, %c0_248, %c0_249], %326 {strides = array<i32>} : memref<1x19x8x128xf32, #tpu.memory_space<vmem>>, vector<1x1x8x128xf32>,
    %c12_i32 = arith.constant 12 : i32
    %327 = vector.broadcast %c12_i32 : i32 to vector<8x128xi32>
    %328 = arith.cmpi eq, %6, %327 : vector<8x128xi32>
    %329 = vector.extract_strided_slice %4 {offsets = [12, 0, 0], sizes = [1, 8, 128], strides = [1, 1, 1]} : vector<19x8x128xf32> to vector<1x8x128xf32>
    %330 = vector.shape_cast %329 : vector<1x8x128xf32> to vector<8x128xf32>
    %331 = arith.subf %14, %330 : vector<8x128xf32>
    %cst_250 = arith.constant 0.000000e+00 : f32
    %332 = vector.broadcast %cst_250 : f32 to vector<8x128xf32>
    %333 = arith.select %328, %331, %332 : vector<8x128xi1>, vector<8x128xf32>
    %cst_251 = arith.constant 1.000000e+00 : f32
    %cst_252 = arith.constant 0.000000e+00 : f32
    %334 = vector.broadcast %cst_251 : f32 to vector<8x128xf32>
    %335 = vector.broadcast %cst_252 : f32 to vector<8x128xf32>
    %336 = arith.select %328, %334, %335 : vector<8x128xi1>, vector<8x128xf32>
    %c0_253 = arith.constant 0 : index
    %c12 = arith.constant 12 : index
    %c0_254 = arith.constant 0 : index
    %c0_255 = arith.constant 0 : index
    %337 = vector.load %arg4[%c0_253, %c12, %c0_254, %c0_255] : memref<1x19x8x128xf32, #tpu.memory_space<vmem>>, vector<1x1x8x128xf32>
    %338 = vector.shape_cast %337 : vector<1x1x8x128xf32> to vector<8x128xf32>
    %339 = vector.shape_cast %333 : vector<8x128xf32> to vector<1x8x128xf32>
    %cst_256 = arith.constant dense<0.000000e+00> : vector<8x128xf32>
    %340 = vector.multi_reduction <add>, %339, %cst_256 [0] : vector<1x8x128xf32> to vector<8x128xf32>
    %341 = arith.addf %338, %340 : vector<8x128xf32>
    %c0_257 = arith.constant 0 : index
    %c12_258 = arith.constant 12 : index
    %c0_259 = arith.constant 0 : index
    %c0_260 = arith.constant 0 : index
    %342 = vector.load %arg4[%c0_257, %c12_258, %c0_259, %c0_260] : memref<1x19x8x128xf32, #tpu.memory_space<vmem>>, vector<1x1x8x128xf32>
    %343 = vector.shape_cast %342 : vector<1x1x8x128xf32> to vector<8x128xf32>
    %344 = vector.shape_cast %341 : vector<8x128xf32> to vector<1x1x8x128xf32>
    tpu.vector_store %arg4[%c0_257, %c12_258, %c0_259, %c0_260], %344 {strides = array<i32>} : memref<1x19x8x128xf32, #tpu.memory_space<vmem>>, vector<1x1x8x128xf32>,
    %c0_261 = arith.constant 0 : index
    %c12_262 = arith.constant 12 : index
    %c0_263 = arith.constant 0 : index
    %c0_264 = arith.constant 0 : index
    %345 = vector.load %arg5[%c0_261, %c12_262, %c0_263, %c0_264] : memref<1x19x8x128xf32, #tpu.memory_space<vmem>>, vector<1x1x8x128xf32>
    %346 = vector.shape_cast %345 : vector<1x1x8x128xf32> to vector<8x128xf32>
    %347 = vector.shape_cast %336 : vector<8x128xf32> to vector<1x8x128xf32>
    %cst_265 = arith.constant dense<0.000000e+00> : vector<8x128xf32>
    %348 = vector.multi_reduction <add>, %347, %cst_265 [0] : vector<1x8x128xf32> to vector<8x128xf32>
    %349 = arith.addf %346, %348 : vector<8x128xf32>
    %c0_266 = arith.constant 0 : index
    %c12_267 = arith.constant 12 : index
    %c0_268 = arith.constant 0 : index
    %c0_269 = arith.constant 0 : index
    %350 = vector.load %arg5[%c0_266, %c12_267, %c0_268, %c0_269] : memref<1x19x8x128xf32, #tpu.memory_space<vmem>>, vector<1x1x8x128xf32>
    %351 = vector.shape_cast %350 : vector<1x1x8x128xf32> to vector<8x128xf32>
    %352 = vector.shape_cast %349 : vector<8x128xf32> to vector<1x1x8x128xf32>
    tpu.vector_store %arg5[%c0_266, %c12_267, %c0_268, %c0_269], %352 {strides = array<i32>} : memref<1x19x8x128xf32, #tpu.memory_space<vmem>>, vector<1x1x8x128xf32>,
    %c13_i32 = arith.constant 13 : i32
    %353 = vector.broadcast %c13_i32 : i32 to vector<8x128xi32>
    %354 = arith.cmpi eq, %6, %353 : vector<8x128xi32>
    %355 = vector.extract_strided_slice %4 {offsets = [13, 0, 0], sizes = [1, 8, 128], strides = [1, 1, 1]} : vector<19x8x128xf32> to vector<1x8x128xf32>
    %356 = vector.shape_cast %355 : vector<1x8x128xf32> to vector<8x128xf32>
    %357 = arith.subf %14, %356 : vector<8x128xf32>
    %cst_270 = arith.constant 0.000000e+00 : f32
    %358 = vector.broadcast %cst_270 : f32 to vector<8x128xf32>
    %359 = arith.select %354, %357, %358 : vector<8x128xi1>, vector<8x128xf32>
    %cst_271 = arith.constant 1.000000e+00 : f32
    %cst_272 = arith.constant 0.000000e+00 : f32
    %360 = vector.broadcast %cst_271 : f32 to vector<8x128xf32>
    %361 = vector.broadcast %cst_272 : f32 to vector<8x128xf32>
    %362 = arith.select %354, %360, %361 : vector<8x128xi1>, vector<8x128xf32>
    %c0_273 = arith.constant 0 : index
    %c13 = arith.constant 13 : index
    %c0_274 = arith.constant 0 : index
    %c0_275 = arith.constant 0 : index
    %363 = vector.load %arg4[%c0_273, %c13, %c0_274, %c0_275] : memref<1x19x8x128xf32, #tpu.memory_space<vmem>>, vector<1x1x8x128xf32>
    %364 = vector.shape_cast %363 : vector<1x1x8x128xf32> to vector<8x128xf32>
    %365 = vector.shape_cast %359 : vector<8x128xf32> to vector<1x8x128xf32>
    %cst_276 = arith.constant dense<0.000000e+00> : vector<8x128xf32>
    %366 = vector.multi_reduction <add>, %365, %cst_276 [0] : vector<1x8x128xf32> to vector<8x128xf32>
    %367 = arith.addf %364, %366 : vector<8x128xf32>
    %c0_277 = arith.constant 0 : index
    %c13_278 = arith.constant 13 : index
    %c0_279 = arith.constant 0 : index
    %c0_280 = arith.constant 0 : index
    %368 = vector.load %arg4[%c0_277, %c13_278, %c0_279, %c0_280] : memref<1x19x8x128xf32, #tpu.memory_space<vmem>>, vector<1x1x8x128xf32>
    %369 = vector.shape_cast %368 : vector<1x1x8x128xf32> to vector<8x128xf32>
    %370 = vector.shape_cast %367 : vector<8x128xf32> to vector<1x1x8x128xf32>
    tpu.vector_store %arg4[%c0_277, %c13_278, %c0_279, %c0_280], %370 {strides = array<i32>} : memref<1x19x8x128xf32, #tpu.memory_space<vmem>>, vector<1x1x8x128xf32>,
    %c0_281 = arith.constant 0 : index
    %c13_282 = arith.constant 13 : index
    %c0_283 = arith.constant 0 : index
    %c0_284 = arith.constant 0 : index
    %371 = vector.load %arg5[%c0_281, %c13_282, %c0_283, %c0_284] : memref<1x19x8x128xf32, #tpu.memory_space<vmem>>, vector<1x1x8x128xf32>
    %372 = vector.shape_cast %371 : vector<1x1x8x128xf32> to vector<8x128xf32>
    %373 = vector.shape_cast %362 : vector<8x128xf32> to vector<1x8x128xf32>
    %cst_285 = arith.constant dense<0.000000e+00> : vector<8x128xf32>
    %374 = vector.multi_reduction <add>, %373, %cst_285 [0] : vector<1x8x128xf32> to vector<8x128xf32>
    %375 = arith.addf %372, %374 : vector<8x128xf32>
    %c0_286 = arith.constant 0 : index
    %c13_287 = arith.constant 13 : index
    %c0_288 = arith.constant 0 : index
    %c0_289 = arith.constant 0 : index
    %376 = vector.load %arg5[%c0_286, %c13_287, %c0_288, %c0_289] : memref<1x19x8x128xf32, #tpu.memory_space<vmem>>, vector<1x1x8x128xf32>
    %377 = vector.shape_cast %376 : vector<1x1x8x128xf32> to vector<8x128xf32>
    %378 = vector.shape_cast %375 : vector<8x128xf32> to vector<1x1x8x128xf32>
    tpu.vector_store %arg5[%c0_286, %c13_287, %c0_288, %c0_289], %378 {strides = array<i32>} : memref<1x19x8x128xf32, #tpu.memory_space<vmem>>, vector<1x1x8x128xf32>,
    %c14_i32 = arith.constant 14 : i32
    %379 = vector.broadcast %c14_i32 : i32 to vector<8x128xi32>
    %380 = arith.cmpi eq, %6, %379 : vector<8x128xi32>
    %381 = vector.extract_strided_slice %4 {offsets = [14, 0, 0], sizes = [1, 8, 128], strides = [1, 1, 1]} : vector<19x8x128xf32> to vector<1x8x128xf32>
    %382 = vector.shape_cast %381 : vector<1x8x128xf32> to vector<8x128xf32>
    %383 = arith.subf %14, %382 : vector<8x128xf32>
    %cst_290 = arith.constant 0.000000e+00 : f32
    %384 = vector.broadcast %cst_290 : f32 to vector<8x128xf32>
    %385 = arith.select %380, %383, %384 : vector<8x128xi1>, vector<8x128xf32>
    %cst_291 = arith.constant 1.000000e+00 : f32
    %cst_292 = arith.constant 0.000000e+00 : f32
    %386 = vector.broadcast %cst_291 : f32 to vector<8x128xf32>
    %387 = vector.broadcast %cst_292 : f32 to vector<8x128xf32>
    %388 = arith.select %380, %386, %387 : vector<8x128xi1>, vector<8x128xf32>
    %c0_293 = arith.constant 0 : index
    %c14 = arith.constant 14 : index
    %c0_294 = arith.constant 0 : index
    %c0_295 = arith.constant 0 : index
    %389 = vector.load %arg4[%c0_293, %c14, %c0_294, %c0_295] : memref<1x19x8x128xf32, #tpu.memory_space<vmem>>, vector<1x1x8x128xf32>
    %390 = vector.shape_cast %389 : vector<1x1x8x128xf32> to vector<8x128xf32>
    %391 = vector.shape_cast %385 : vector<8x128xf32> to vector<1x8x128xf32>
    %cst_296 = arith.constant dense<0.000000e+00> : vector<8x128xf32>
    %392 = vector.multi_reduction <add>, %391, %cst_296 [0] : vector<1x8x128xf32> to vector<8x128xf32>
    %393 = arith.addf %390, %392 : vector<8x128xf32>
    %c0_297 = arith.constant 0 : index
    %c14_298 = arith.constant 14 : index
    %c0_299 = arith.constant 0 : index
    %c0_300 = arith.constant 0 : index
    %394 = vector.load %arg4[%c0_297, %c14_298, %c0_299, %c0_300] : memref<1x19x8x128xf32, #tpu.memory_space<vmem>>, vector<1x1x8x128xf32>
    %395 = vector.shape_cast %394 : vector<1x1x8x128xf32> to vector<8x128xf32>
    %396 = vector.shape_cast %393 : vector<8x128xf32> to vector<1x1x8x128xf32>
    tpu.vector_store %arg4[%c0_297, %c14_298, %c0_299, %c0_300], %396 {strides = array<i32>} : memref<1x19x8x128xf32, #tpu.memory_space<vmem>>, vector<1x1x8x128xf32>,
    %c0_301 = arith.constant 0 : index
    %c14_302 = arith.constant 14 : index
    %c0_303 = arith.constant 0 : index
    %c0_304 = arith.constant 0 : index
    %397 = vector.load %arg5[%c0_301, %c14_302, %c0_303, %c0_304] : memref<1x19x8x128xf32, #tpu.memory_space<vmem>>, vector<1x1x8x128xf32>
    %398 = vector.shape_cast %397 : vector<1x1x8x128xf32> to vector<8x128xf32>
    %399 = vector.shape_cast %388 : vector<8x128xf32> to vector<1x8x128xf32>
    %cst_305 = arith.constant dense<0.000000e+00> : vector<8x128xf32>
    %400 = vector.multi_reduction <add>, %399, %cst_305 [0] : vector<1x8x128xf32> to vector<8x128xf32>
    %401 = arith.addf %398, %400 : vector<8x128xf32>
    %c0_306 = arith.constant 0 : index
    %c14_307 = arith.constant 14 : index
    %c0_308 = arith.constant 0 : index
    %c0_309 = arith.constant 0 : index
    %402 = vector.load %arg5[%c0_306, %c14_307, %c0_308, %c0_309] : memref<1x19x8x128xf32, #tpu.memory_space<vmem>>, vector<1x1x8x128xf32>
    %403 = vector.shape_cast %402 : vector<1x1x8x128xf32> to vector<8x128xf32>
    %404 = vector.shape_cast %401 : vector<8x128xf32> to vector<1x1x8x128xf32>
    tpu.vector_store %arg5[%c0_306, %c14_307, %c0_308, %c0_309], %404 {strides = array<i32>} : memref<1x19x8x128xf32, #tpu.memory_space<vmem>>, vector<1x1x8x128xf32>,
    %c15_i32 = arith.constant 15 : i32
    %405 = vector.broadcast %c15_i32 : i32 to vector<8x128xi32>
    %406 = arith.cmpi eq, %6, %405 : vector<8x128xi32>
    %407 = vector.extract_strided_slice %4 {offsets = [15, 0, 0], sizes = [1, 8, 128], strides = [1, 1, 1]} : vector<19x8x128xf32> to vector<1x8x128xf32>
    %408 = vector.shape_cast %407 : vector<1x8x128xf32> to vector<8x128xf32>
    %409 = arith.subf %14, %408 : vector<8x128xf32>
    %cst_310 = arith.constant 0.000000e+00 : f32
    %410 = vector.broadcast %cst_310 : f32 to vector<8x128xf32>
    %411 = arith.select %406, %409, %410 : vector<8x128xi1>, vector<8x128xf32>
    %cst_311 = arith.constant 1.000000e+00 : f32
    %cst_312 = arith.constant 0.000000e+00 : f32
    %412 = vector.broadcast %cst_311 : f32 to vector<8x128xf32>
    %413 = vector.broadcast %cst_312 : f32 to vector<8x128xf32>
    %414 = arith.select %406, %412, %413 : vector<8x128xi1>, vector<8x128xf32>
    %c0_313 = arith.constant 0 : index
    %c15 = arith.constant 15 : index
    %c0_314 = arith.constant 0 : index
    %c0_315 = arith.constant 0 : index
    %415 = vector.load %arg4[%c0_313, %c15, %c0_314, %c0_315] : memref<1x19x8x128xf32, #tpu.memory_space<vmem>>, vector<1x1x8x128xf32>
    %416 = vector.shape_cast %415 : vector<1x1x8x128xf32> to vector<8x128xf32>
    %417 = vector.shape_cast %411 : vector<8x128xf32> to vector<1x8x128xf32>
    %cst_316 = arith.constant dense<0.000000e+00> : vector<8x128xf32>
    %418 = vector.multi_reduction <add>, %417, %cst_316 [0] : vector<1x8x128xf32> to vector<8x128xf32>
    %419 = arith.addf %416, %418 : vector<8x128xf32>
    %c0_317 = arith.constant 0 : index
    %c15_318 = arith.constant 15 : index
    %c0_319 = arith.constant 0 : index
    %c0_320 = arith.constant 0 : index
    %420 = vector.load %arg4[%c0_317, %c15_318, %c0_319, %c0_320] : memref<1x19x8x128xf32, #tpu.memory_space<vmem>>, vector<1x1x8x128xf32>
    %421 = vector.shape_cast %420 : vector<1x1x8x128xf32> to vector<8x128xf32>
    %422 = vector.shape_cast %419 : vector<8x128xf32> to vector<1x1x8x128xf32>
    tpu.vector_store %arg4[%c0_317, %c15_318, %c0_319, %c0_320], %422 {strides = array<i32>} : memref<1x19x8x128xf32, #tpu.memory_space<vmem>>, vector<1x1x8x128xf32>,
    %c0_321 = arith.constant 0 : index
    %c15_322 = arith.constant 15 : index
    %c0_323 = arith.constant 0 : index
    %c0_324 = arith.constant 0 : index
    %423 = vector.load %arg5[%c0_321, %c15_322, %c0_323, %c0_324] : memref<1x19x8x128xf32, #tpu.memory_space<vmem>>, vector<1x1x8x128xf32>
    %424 = vector.shape_cast %423 : vector<1x1x8x128xf32> to vector<8x128xf32>
    %425 = vector.shape_cast %414 : vector<8x128xf32> to vector<1x8x128xf32>
    %cst_325 = arith.constant dense<0.000000e+00> : vector<8x128xf32>
    %426 = vector.multi_reduction <add>, %425, %cst_325 [0] : vector<1x8x128xf32> to vector<8x128xf32>
    %427 = arith.addf %424, %426 : vector<8x128xf32>
    %c0_326 = arith.constant 0 : index
    %c15_327 = arith.constant 15 : index
    %c0_328 = arith.constant 0 : index
    %c0_329 = arith.constant 0 : index
    %428 = vector.load %arg5[%c0_326, %c15_327, %c0_328, %c0_329] : memref<1x19x8x128xf32, #tpu.memory_space<vmem>>, vector<1x1x8x128xf32>
    %429 = vector.shape_cast %428 : vector<1x1x8x128xf32> to vector<8x128xf32>
    %430 = vector.shape_cast %427 : vector<8x128xf32> to vector<1x1x8x128xf32>
    tpu.vector_store %arg5[%c0_326, %c15_327, %c0_328, %c0_329], %430 {strides = array<i32>} : memref<1x19x8x128xf32, #tpu.memory_space<vmem>>, vector<1x1x8x128xf32>,
    %c16_i32 = arith.constant 16 : i32
    %431 = vector.broadcast %c16_i32 : i32 to vector<8x128xi32>
    %432 = arith.cmpi eq, %6, %431 : vector<8x128xi32>
    %433 = vector.extract_strided_slice %4 {offsets = [16, 0, 0], sizes = [1, 8, 128], strides = [1, 1, 1]} : vector<19x8x128xf32> to vector<1x8x128xf32>
    %434 = vector.shape_cast %433 : vector<1x8x128xf32> to vector<8x128xf32>
    %435 = arith.subf %14, %434 : vector<8x128xf32>
    %cst_330 = arith.constant 0.000000e+00 : f32
    %436 = vector.broadcast %cst_330 : f32 to vector<8x128xf32>
    %437 = arith.select %432, %435, %436 : vector<8x128xi1>, vector<8x128xf32>
    %cst_331 = arith.constant 1.000000e+00 : f32
    %cst_332 = arith.constant 0.000000e+00 : f32
    %438 = vector.broadcast %cst_331 : f32 to vector<8x128xf32>
    %439 = vector.broadcast %cst_332 : f32 to vector<8x128xf32>
    %440 = arith.select %432, %438, %439 : vector<8x128xi1>, vector<8x128xf32>
    %c0_333 = arith.constant 0 : index
    %c16 = arith.constant 16 : index
    %c0_334 = arith.constant 0 : index
    %c0_335 = arith.constant 0 : index
    %441 = vector.load %arg4[%c0_333, %c16, %c0_334, %c0_335] : memref<1x19x8x128xf32, #tpu.memory_space<vmem>>, vector<1x1x8x128xf32>
    %442 = vector.shape_cast %441 : vector<1x1x8x128xf32> to vector<8x128xf32>
    %443 = vector.shape_cast %437 : vector<8x128xf32> to vector<1x8x128xf32>
    %cst_336 = arith.constant dense<0.000000e+00> : vector<8x128xf32>
    %444 = vector.multi_reduction <add>, %443, %cst_336 [0] : vector<1x8x128xf32> to vector<8x128xf32>
    %445 = arith.addf %442, %444 : vector<8x128xf32>
    %c0_337 = arith.constant 0 : index
    %c16_338 = arith.constant 16 : index
    %c0_339 = arith.constant 0 : index
    %c0_340 = arith.constant 0 : index
    %446 = vector.load %arg4[%c0_337, %c16_338, %c0_339, %c0_340] : memref<1x19x8x128xf32, #tpu.memory_space<vmem>>, vector<1x1x8x128xf32>
    %447 = vector.shape_cast %446 : vector<1x1x8x128xf32> to vector<8x128xf32>
    %448 = vector.shape_cast %445 : vector<8x128xf32> to vector<1x1x8x128xf32>
    tpu.vector_store %arg4[%c0_337, %c16_338, %c0_339, %c0_340], %448 {strides = array<i32>} : memref<1x19x8x128xf32, #tpu.memory_space<vmem>>, vector<1x1x8x128xf32>,
    %c0_341 = arith.constant 0 : index
    %c16_342 = arith.constant 16 : index
    %c0_343 = arith.constant 0 : index
    %c0_344 = arith.constant 0 : index
    %449 = vector.load %arg5[%c0_341, %c16_342, %c0_343, %c0_344] : memref<1x19x8x128xf32, #tpu.memory_space<vmem>>, vector<1x1x8x128xf32>
    %450 = vector.shape_cast %449 : vector<1x1x8x128xf32> to vector<8x128xf32>
    %451 = vector.shape_cast %440 : vector<8x128xf32> to vector<1x8x128xf32>
    %cst_345 = arith.constant dense<0.000000e+00> : vector<8x128xf32>
    %452 = vector.multi_reduction <add>, %451, %cst_345 [0] : vector<1x8x128xf32> to vector<8x128xf32>
    %453 = arith.addf %450, %452 : vector<8x128xf32>
    %c0_346 = arith.constant 0 : index
    %c16_347 = arith.constant 16 : index
    %c0_348 = arith.constant 0 : index
    %c0_349 = arith.constant 0 : index
    %454 = vector.load %arg5[%c0_346, %c16_347, %c0_348, %c0_349] : memref<1x19x8x128xf32, #tpu.memory_space<vmem>>, vector<1x1x8x128xf32>
    %455 = vector.shape_cast %454 : vector<1x1x8x128xf32> to vector<8x128xf32>
    %456 = vector.shape_cast %453 : vector<8x128xf32> to vector<1x1x8x128xf32>
    tpu.vector_store %arg5[%c0_346, %c16_347, %c0_348, %c0_349], %456 {strides = array<i32>} : memref<1x19x8x128xf32, #tpu.memory_space<vmem>>, vector<1x1x8x128xf32>,
    %c17_i32 = arith.constant 17 : i32
    %457 = vector.broadcast %c17_i32 : i32 to vector<8x128xi32>
    %458 = arith.cmpi eq, %6, %457 : vector<8x128xi32>
    %459 = vector.extract_strided_slice %4 {offsets = [17, 0, 0], sizes = [1, 8, 128], strides = [1, 1, 1]} : vector<19x8x128xf32> to vector<1x8x128xf32>
    %460 = vector.shape_cast %459 : vector<1x8x128xf32> to vector<8x128xf32>
    %461 = arith.subf %14, %460 : vector<8x128xf32>
    %cst_350 = arith.constant 0.000000e+00 : f32
    %462 = vector.broadcast %cst_350 : f32 to vector<8x128xf32>
    %463 = arith.select %458, %461, %462 : vector<8x128xi1>, vector<8x128xf32>
    %cst_351 = arith.constant 1.000000e+00 : f32
    %cst_352 = arith.constant 0.000000e+00 : f32
    %464 = vector.broadcast %cst_351 : f32 to vector<8x128xf32>
    %465 = vector.broadcast %cst_352 : f32 to vector<8x128xf32>
    %466 = arith.select %458, %464, %465 : vector<8x128xi1>, vector<8x128xf32>
    %c0_353 = arith.constant 0 : index
    %c17 = arith.constant 17 : index
    %c0_354 = arith.constant 0 : index
    %c0_355 = arith.constant 0 : index
    %467 = vector.load %arg4[%c0_353, %c17, %c0_354, %c0_355] : memref<1x19x8x128xf32, #tpu.memory_space<vmem>>, vector<1x1x8x128xf32>
    %468 = vector.shape_cast %467 : vector<1x1x8x128xf32> to vector<8x128xf32>
    %469 = vector.shape_cast %463 : vector<8x128xf32> to vector<1x8x128xf32>
    %cst_356 = arith.constant dense<0.000000e+00> : vector<8x128xf32>
    %470 = vector.multi_reduction <add>, %469, %cst_356 [0] : vector<1x8x128xf32> to vector<8x128xf32>
    %471 = arith.addf %468, %470 : vector<8x128xf32>
    %c0_357 = arith.constant 0 : index
    %c17_358 = arith.constant 17 : index
    %c0_359 = arith.constant 0 : index
    %c0_360 = arith.constant 0 : index
    %472 = vector.load %arg4[%c0_357, %c17_358, %c0_359, %c0_360] : memref<1x19x8x128xf32, #tpu.memory_space<vmem>>, vector<1x1x8x128xf32>
    %473 = vector.shape_cast %472 : vector<1x1x8x128xf32> to vector<8x128xf32>
    %474 = vector.shape_cast %471 : vector<8x128xf32> to vector<1x1x8x128xf32>
    tpu.vector_store %arg4[%c0_357, %c17_358, %c0_359, %c0_360], %474 {strides = array<i32>} : memref<1x19x8x128xf32, #tpu.memory_space<vmem>>, vector<1x1x8x128xf32>,
    %c0_361 = arith.constant 0 : index
    %c17_362 = arith.constant 17 : index
    %c0_363 = arith.constant 0 : index
    %c0_364 = arith.constant 0 : index
    %475 = vector.load %arg5[%c0_361, %c17_362, %c0_363, %c0_364] : memref<1x19x8x128xf32, #tpu.memory_space<vmem>>, vector<1x1x8x128xf32>
    %476 = vector.shape_cast %475 : vector<1x1x8x128xf32> to vector<8x128xf32>
    %477 = vector.shape_cast %466 : vector<8x128xf32> to vector<1x8x128xf32>
    %cst_365 = arith.constant dense<0.000000e+00> : vector<8x128xf32>
    %478 = vector.multi_reduction <add>, %477, %cst_365 [0] : vector<1x8x128xf32> to vector<8x128xf32>
    %479 = arith.addf %476, %478 : vector<8x128xf32>
    %c0_366 = arith.constant 0 : index
    %c17_367 = arith.constant 17 : index
    %c0_368 = arith.constant 0 : index
    %c0_369 = arith.constant 0 : index
    %480 = vector.load %arg5[%c0_366, %c17_367, %c0_368, %c0_369] : memref<1x19x8x128xf32, #tpu.memory_space<vmem>>, vector<1x1x8x128xf32>
    %481 = vector.shape_cast %480 : vector<1x1x8x128xf32> to vector<8x128xf32>
    %482 = vector.shape_cast %479 : vector<8x128xf32> to vector<1x1x8x128xf32>
    tpu.vector_store %arg5[%c0_366, %c17_367, %c0_368, %c0_369], %482 {strides = array<i32>} : memref<1x19x8x128xf32, #tpu.memory_space<vmem>>, vector<1x1x8x128xf32>,
    %c18_i32 = arith.constant 18 : i32
    %483 = vector.broadcast %c18_i32 : i32 to vector<8x128xi32>
    %484 = arith.cmpi eq, %6, %483 : vector<8x128xi32>
    %485 = vector.extract_strided_slice %4 {offsets = [18, 0, 0], sizes = [1, 8, 128], strides = [1, 1, 1]} : vector<19x8x128xf32> to vector<1x8x128xf32>
    %486 = vector.shape_cast %485 : vector<1x8x128xf32> to vector<8x128xf32>
    %487 = arith.subf %14, %486 : vector<8x128xf32>
    %cst_370 = arith.constant 0.000000e+00 : f32
    %488 = vector.broadcast %cst_370 : f32 to vector<8x128xf32>
    %489 = arith.select %484, %487, %488 : vector<8x128xi1>, vector<8x128xf32>
    %cst_371 = arith.constant 1.000000e+00 : f32
    %cst_372 = arith.constant 0.000000e+00 : f32
    %490 = vector.broadcast %cst_371 : f32 to vector<8x128xf32>
    %491 = vector.broadcast %cst_372 : f32 to vector<8x128xf32>
    %492 = arith.select %484, %490, %491 : vector<8x128xi1>, vector<8x128xf32>
    %c0_373 = arith.constant 0 : index
    %c18 = arith.constant 18 : index
    %c0_374 = arith.constant 0 : index
    %c0_375 = arith.constant 0 : index
    %493 = vector.load %arg4[%c0_373, %c18, %c0_374, %c0_375] : memref<1x19x8x128xf32, #tpu.memory_space<vmem>>, vector<1x1x8x128xf32>
    %494 = vector.shape_cast %493 : vector<1x1x8x128xf32> to vector<8x128xf32>
    %495 = vector.shape_cast %489 : vector<8x128xf32> to vector<1x8x128xf32>
    %cst_376 = arith.constant dense<0.000000e+00> : vector<8x128xf32>
    %496 = vector.multi_reduction <add>, %495, %cst_376 [0] : vector<1x8x128xf32> to vector<8x128xf32>
    %497 = arith.addf %494, %496 : vector<8x128xf32>
    %c0_377 = arith.constant 0 : index
    %c18_378 = arith.constant 18 : index
    %c0_379 = arith.constant 0 : index
    %c0_380 = arith.constant 0 : index
    %498 = vector.load %arg4[%c0_377, %c18_378, %c0_379, %c0_380] : memref<1x19x8x128xf32, #tpu.memory_space<vmem>>, vector<1x1x8x128xf32>
    %499 = vector.shape_cast %498 : vector<1x1x8x128xf32> to vector<8x128xf32>
    %500 = vector.shape_cast %497 : vector<8x128xf32> to vector<1x1x8x128xf32>
    tpu.vector_store %arg4[%c0_377, %c18_378, %c0_379, %c0_380], %500 {strides = array<i32>} : memref<1x19x8x128xf32, #tpu.memory_space<vmem>>, vector<1x1x8x128xf32>,
    %c0_381 = arith.constant 0 : index
    %c18_382 = arith.constant 18 : index
    %c0_383 = arith.constant 0 : index
    %c0_384 = arith.constant 0 : index
    %501 = vector.load %arg5[%c0_381, %c18_382, %c0_383, %c0_384] : memref<1x19x8x128xf32, #tpu.memory_space<vmem>>, vector<1x1x8x128xf32>
    %502 = vector.shape_cast %501 : vector<1x1x8x128xf32> to vector<8x128xf32>
    %503 = vector.shape_cast %492 : vector<8x128xf32> to vector<1x8x128xf32>
    %cst_385 = arith.constant dense<0.000000e+00> : vector<8x128xf32>
    %504 = vector.multi_reduction <add>, %503, %cst_385 [0] : vector<1x8x128xf32> to vector<8x128xf32>
    %505 = arith.addf %502, %504 : vector<8x128xf32>
    %c0_386 = arith.constant 0 : index
    %c18_387 = arith.constant 18 : index
    %c0_388 = arith.constant 0 : index
    %c0_389 = arith.constant 0 : index
    %506 = vector.load %arg5[%c0_386, %c18_387, %c0_388, %c0_389] : memref<1x19x8x128xf32, #tpu.memory_space<vmem>>, vector<1x1x8x128xf32>
    %507 = vector.shape_cast %506 : vector<1x1x8x128xf32> to vector<8x128xf32>
    %508 = vector.shape_cast %505 : vector<8x128xf32> to vector<1x1x8x128xf32>
    tpu.vector_store %arg5[%c0_386, %c18_387, %c0_388, %c0_389], %508 {strides = array<i32>} : memref<1x19x8x128xf32, #tpu.memory_space<vmem>>, vector<1x1x8x128xf32>,
    return
  }
  func.func @transform_0(%arg0: i32, %arg1: i32) -> (i32, i32, i32, i32) {
    %c0_i32 = arith.constant 0 : i32
    %c0_i32_0 = arith.constant 0 : i32
    %c0_i32_1 = arith.constant 0 : i32
    return %arg0, %c0_i32, %arg1, %c0_i32_0 : i32, i32, i32, i32
  }
  func.func @transform_1(%arg0: i32, %arg1: i32) -> (i32, i32, i32) {
    %c0_i32 = arith.constant 0 : i32
    %c0_i32_0 = arith.constant 0 : i32
    return %arg0, %arg1, %c0_i32 : i32, i32, i32
  }
  func.func @transform_2(%arg0: i32, %arg1: i32) -> (i32, i32, i32, i32) {
    %c0_i32 = arith.constant 0 : i32
    %c0_i32_0 = arith.constant 0 : i32
    %c0_i32_1 = arith.constant 0 : i32
    %c0_i32_2 = arith.constant 0 : i32
    return %arg0, %c0_i32, %c0_i32_0, %c0_i32_1 : i32, i32, i32, i32
  }
  func.func @transform_3(%arg0: i32, %arg1: i32) -> (i32, i32, i32, i32) {
    %c0_i32 = arith.constant 0 : i32
    %c0_i32_0 = arith.constant 0 : i32
    %c0_i32_1 = arith.constant 0 : i32
    %c0_i32_2 = arith.constant 0 : i32
    return %arg0, %c0_i32, %c0_i32_0, %c0_i32_1 : i32, i32, i32, i32
  }
}

</mosaic_0001>

<llo_original>
// kernel: tpu_custom_call.1
$region0: #{tpu_custom_call.1}
  #allocation0 [shape = 'u32[]', space=smem, size = 0x4, offset = 0x4, fixed_abs, tag = 'smem constant byte address 0x4 - core index']
  #allocation1 [shape = 'u32[144,128]{1,0:T(1,128)}', space=vmem, size = 0x12000, scoped, tag = 'internal scratch']
  %s0 = inlined_call_operand.hbm [shape: f32[2,19,8,128], index: 0, kind: input, shape index: {}]
  %s1 = inlined_call_operand.hbm [shape: s32[2,8,128], index: 1, kind: input, shape index: {}]
  %s2 = inlined_call_operand.hbm [shape: f32[2,19,8,128], index: 2, kind: output, shape index: {0}]
  %s3 = inlined_call_operand.hbm [shape: f32[2,19,8,128], index: 3, kind: output, shape index: {1}]
  %4 = xla_tuple %s2, %s3
  %s5 = sld [smem:[#allocation0]]
  $region61: #{tpu_custom_call.1} parent=0
    _
  %s7 = ssub.s32 1, %s5
  %s8 = scalar_select 0, %s7, %s5
  $region1: #{tpu_custom_call.1} parent=0
    #allocation2 [shape = 'u8[155648]{0}', space=vmem, size = 0x26000, scoped, tag = 'input window, operand 0']
    #allocation3 [shape = 's32[2]{0}', space=sflag, size = 0x8, scoped, tag = 'scoped memory for tpu_custom_call.1']
    #allocation4 [shape = 's32[2]{0}', space=sflag, size = 0x8, scoped, tag = 'scoped memory for tpu_custom_call.1']
    #allocation5 [shape = 'u8[8192]{0}', space=vmem, size = 0x2000, scoped, tag = 'input window, operand 1']
    #allocation6 [shape = 's32[2]{0}', space=sflag, size = 0x8, scoped, tag = 'scoped memory for tpu_custom_call.1']
    #allocation7 [shape = 'u8[155648]{0}', space=vmem, size = 0x26000, scoped, tag = 'output window, operand 0']
    #allocation8 [shape = 'u8[155648]{0}', space=vmem, size = 0x26000, scoped, tag = 'output window, operand 1']
    #allocation9 [shape = 's32[2]{0}', space=sflag, size = 0x8, scoped, tag = 'scoped memory for tpu_custom_call.1']
    %9 = vsyncpa [#allocation3], 0
    %s10 = scalar_lea.sflag [#allocation3], 1
    %11 = vsyncpa %s10, 0
    %12 = vsyncpa [#allocation6], 0
    %s13 = scalar_lea.sflag [#allocation6], 1
    %14 = vsyncpa %s13, 0
    %15 = vsyncpa [#allocation4], 0
    %s16 = scalar_lea.sflag [#allocation4], 1
    %17 = vsyncpa %s16, 0
    %18 = vsyncpa [#allocation9], 0
    %s19 = scalar_lea.sflag [#allocation9], 1
    %20 = vsyncpa %s19, 0
    loop: start=0, step=1, limit=4
    $region2: #{tpu_custom_call.1} parent=1 // loop_pre_header
      _
    $region3: #{tpu_custom_call.1} parent=1 // loop_header
      %s22 = sphi 0, %s26
      %p23 = scmp.ge.s32.totalorder %s22, 4
      %s29 = sphi 0, %s41
      %s30 = sphi 0, %s37
      %s31 = sphi 0, %s29
      %s32 = sphi 0, %s30
      %s33 = sphi 0, %s31
      %s34 = sphi 0, %s32
      %s46 = sphi 0, %s48
      %s49 = sphi 0, %s46
      %s50 = sphi 0, %s49
      %s66 = sphi 0, %s50
      %s74 = sphi 0, %s76
      %s77 = sphi 0, %s74
      %s78 = sphi 0, %s77
      %s94 = sphi 0, %s78
      %s100 = sphi 0, %s102
      %s103 = sphi 0, %s100
      %s104 = sphi 0, %s103
      %s120 = sphi 0, %s104
      %s126 = sphi 0, %s128
      %s129 = sphi 0, %s126
      %s130 = sphi 0, %s129
      %s146 = sphi 0, %s130
    $region4: #{tpu_custom_call.1} parent=1 // loop_header_branch
      %25 = sbr.rel (%p23) target = $region8
    $region5: #{tpu_custom_call.1} parent=1 // loop_body
      %s27 = ssub.s32 %s22, 1
      %s28 = ssub.s32 %s22, 2
      %s35 = sadd.s32 1, %s30
      %p36 = scmp.ge.s32.totalorder %s35, 1
      %s37 = scalar_select %p36, 0, %s35
      %s38 = sadd.s32 1, %s29
      %s39 = scalar_select %p36, %s38, %s29
      %p40 = scmp.ge.s32.totalorder %s39, 2
      %s41 = scalar_select %p40, 0, %s39
      %s42 = ssub.s32 %s29, %s41
      %s43 = ssub.s32 %s30, %s37
      %s44 = sor.u32 %s42, %s43
      %p45 = scmp.eq.s32.totalorder %s44, 0
      %s47 = sadd.s32 %s46, 1
      %s48 = scalar_select %p45, %s46, %s47
      %p51 = pneg %p45
      %p52 = scmp.eq.s32.totalorder %s22, 1
      %p53 = por %p51, %p52
      %p54 = scmp.ne.s32.totalorder %s46, %s49
      %p55 = scmp.eq.s32.totalorder %s22, 0
      %p56 = por %p54, %p55
      %p57 = scmp.ne.s32.totalorder %s46, %s49
      %p58 = scmp.eq.s32.totalorder %s27, 1
      %p59 = por %p57, %p58
      %p60 = scmp.ne.s32.totalorder %s49, %s50
      %p61 = scmp.eq.s32.totalorder %s27, 0
      %p62 = por %p60, %p61
      %p63 = scmp.ne.s32.totalorder %s49, %s50
      %p64 = scmp.eq.s32.totalorder %s28, 1
      %p65 = por %p63, %p64
      %p67 = scmp.ne.s32.totalorder %s50, %s66
      %p68 = scmp.eq.s32.totalorder %s28, 0
      %p69 = por %p67, %p68
      %s70 = ssub.s32 %s29, %s41
      %s71 = ssub.s32 %s30, %s37
      %s72 = sor.u32 %s70, %s71
      %p73 = scmp.eq.s32.totalorder %s72, 0
      %s75 = sadd.s32 %s74, 1
      %s76 = scalar_select %p73, %s74, %s75
      %p79 = pneg %p73
      %p80 = scmp.eq.s32.totalorder %s22, 1
      %p81 = por %p79, %p80
      %p82 = scmp.ne.s32.totalorder %s74, %s77
      %p83 = scmp.eq.s32.totalorder %s22, 0
      %p84 = por %p82, %p83
      %p85 = scmp.ne.s32.totalorder %s74, %s77
      %p86 = scmp.eq.s32.totalorder %s27, 1
      %p87 = por %p85, %p86
      %p88 = scmp.ne.s32.totalorder %s77, %s78
      %p89 = scmp.eq.s32.totalorder %s27, 0
      %p90 = por %p88, %p89
      %p91 = scmp.ne.s32.totalorder %s77, %s78
      %p92 = scmp.eq.s32.totalorder %s28, 1
      %p93 = por %p91, %p92
      %p95 = scmp.ne.s32.totalorder %s78, %s94
      %p96 = scmp.eq.s32.totalorder %s28, 0
      %p97 = por %p95, %p96
      %s98 = ssub.s32 %s29, %s41
      %p99 = scmp.eq.s32.totalorder %s98, 0
      %s101 = sadd.s32 %s100, 1
      %s102 = scalar_select %p99, %s100, %s101
      %p105 = pneg %p99
      %p106 = scmp.eq.s32.totalorder %s22, 1
      %p107 = por %p105, %p106
      %p108 = scmp.ne.s32.totalorder %s100, %s103
      %p109 = scmp.eq.s32.totalorder %s22, 0
      %p110 = por %p108, %p109
      %p111 = scmp.ne.s32.totalorder %s100, %s103
      %p112 = scmp.eq.s32.totalorder %s27, 1
      %p113 = por %p111, %p112
      %p114 = scmp.ne.s32.totalorder %s103, %s104
      %p115 = scmp.eq.s32.totalorder %s27, 0
      %p116 = por %p114, %p115
      %p117 = scmp.ne.s32.totalorder %s103, %s104
      %p118 = scmp.eq.s32.totalorder %s28, 1
      %p119 = por %p117, %p118
      %p121 = scmp.ne.s32.totalorder %s104, %s120
      %p122 = scmp.eq.s32.totalorder %s28, 0
      %p123 = por %p121, %p122
      %s124 = ssub.s32 %s29, %s41
      %p125 = scmp.eq.s32.totalorder %s124, 0
      %s127 = sadd.s32 %s126, 1
      %s128 = scalar_select %p125, %s126, %s127
      %p131 = pneg %p125
      %p132 = scmp.eq.s32.totalorder %s22, 1
      %p133 = por %p131, %p132
      %p134 = scmp.ne.s32.totalorder %s126, %s129
      %p135 = scmp.eq.s32.totalorder %s22, 0
      %p136 = por %p134, %p135
      %p137 = scmp.ne.s32.totalorder %s126, %s129
      %p138 = scmp.eq.s32.totalorder %s27, 1
      %p139 = por %p137, %p138
      %p140 = scmp.ne.s32.totalorder %s129, %s130
      %p141 = scmp.eq.s32.totalorder %s27, 0
      %p142 = por %p140, %p141
      %p143 = scmp.ne.s32.totalorder %s129, %s130
      %p144 = scmp.eq.s32.totalorder %s28, 1
      %p145 = por %p143, %p144
      %p147 = scmp.ne.s32.totalorder %s130, %s146
      %p148 = scmp.eq.s32.totalorder %s28, 0
      %p149 = por %p147, %p148
      %p150 = scmp.le.s32.totalorder 1, %s22
      %p151 = scmp.lt.s32.totalorder %s22, 3
      %p152 = pnand %p150, %p151
      %p153 = pneg %p152
      // Predicated region
      $region9: #{tpu_custom_call.1} parent=5 // pred_check
        _
      $region10: #{tpu_custom_call.1} parent=5 // pred_check_branch
        %155 = sbr.rel (%p152) target = $region12
      $region11: #{tpu_custom_call.1} parent=5 // pred_region
        %s156 = ssub.s32 %s22, 1
      $region12: #{tpu_custom_call.1} parent=5 // pred_fallthru
        _
      %p157 = scmp.lt.s32.totalorder %s22, 2
      // Predicated region
      $region13: #{tpu_custom_call.1} parent=5 // pred_check
        %p158 = pneg %p157
      $region14: #{tpu_custom_call.1} parent=5 // pred_check_branch
        %160 = sbr.rel (%p158) target = $region16
      $region15: #{tpu_custom_call.1} parent=5 // pred_region
        // Predicated region
        $region17: #{tpu_custom_call.1} parent=15 // pred_check
          %p161 = pneg %p56
        $region18: #{tpu_custom_call.1} parent=15 // pred_check_branch
          %163 = sbr.rel (%p161) target = $region20
        $region19: #{tpu_custom_call.1} parent=15 // pred_region
          %s164 = sand.u32 %s46, 1
          %s165 = scalar_lea.sflag [#allocation3], %s164
          %s166 = sand.u32 %s46, 1
          %s167 = smul.addr %s166, 152
          %s168 = scalar_lea.vmem [#allocation2], %s167
          %s170 = ssub.s32 2432, 2432
          %171 = vsyncadd %s165, %s170
          %s172 = smul.addr %s29, 19
          %s173 = sadd.s32 %s30, %s172
          %s174 = smul.addr %s173, 128
          %s175 = scalar_lea.hbm %s0, %s174
          %s176 = sshll.u32 %s168, 4
          %s177 = int_to_ptr.vmem [resolvable:$true] %s176
          %182 = dma.hbm_to_vmem [thread:$0]  %s175, 2432, %s177, %s165, 128, 128, 8
        $region20: #{tpu_custom_call.1} parent=15 // pred_fallthru
          _
        // Predicated region
        $region21: #{tpu_custom_call.1} parent=15 // pred_check
          %p183 = pneg %p84
        $region22: #{tpu_custom_call.1} parent=15 // pred_check_branch
          %185 = sbr.rel (%p183) target = $region24
        $region23: #{tpu_custom_call.1} parent=15 // pred_region
          %s186 = sand.u32 %s74, 1
          %s187 = scalar_lea.sflag [#allocation6], %s186
          %s188 = sand.u32 %s74, 1
          %s189 = smul.addr %s188, 8
          %s190 = scalar_lea.vmem [#allocation5], %s189
          %s192 = ssub.s32 128, 128
          %193 = vsyncadd %s187, %s192
          %s194 = sadd.s32 %s30, %s29
          %s195 = smul.addr %s194, 128
          %s196 = scalar_lea.hbm %s1, %s195
          %s198 = sshll.u32 %s190, 4
          %s199 = int_to_ptr.vmem [resolvable:$true] %s198
          %201 = dma.hbm_to_vmem [thread:$0]  %s196, 128, %s199, %s187
        $region24: #{tpu_custom_call.1} parent=15 // pred_fallthru
          _
      $region16: #{tpu_custom_call.1} parent=5 // pred_fallthru
        _
      %p202 = scmp.le.s32.totalorder 1, %s22
      %p203 = scmp.lt.s32.totalorder %s22, 3
      %p204 = pnand %p202, %p203
      %p205 = pneg %p204
      // Predicated region
      $region25: #{tpu_custom_call.1} parent=5 // pred_check
        _
      $region26: #{tpu_custom_call.1} parent=5 // pred_check_branch
        %207 = sbr.rel (%p204) target = $region28
      $region27: #{tpu_custom_call.1} parent=5 // pred_region
        %s208 = ssub.s32 %s22, 1
        %s209 = sand.u32 %s49, 1
        %s210 = scalar_lea.sflag [#allocation3], %s209
        %s211 = sand.u32 %s49, 1
        %s212 = smul.addr %s211, 152
        %s213 = scalar_lea.vmem [#allocation2], %s212
        // Predicated region
        $region29: #{tpu_custom_call.1} parent=27 // pred_check
          %p214 = pneg %p62
        $region30: #{tpu_custom_call.1} parent=27 // pred_check_branch
          %216 = sbr.rel (%p214) target = $region32
        $region31: #{tpu_custom_call.1} parent=27 // pred_region
          %217 = dma.done %s210, 2432
        $region32: #{tpu_custom_call.1} parent=27 // pred_fallthru
          _
        %s218 = sand.u32 %s77, 1
        %s219 = scalar_lea.sflag [#allocation6], %s218
        %s220 = sand.u32 %s77, 1
        %s221 = smul.addr %s220, 8
        %s222 = scalar_lea.vmem [#allocation5], %s221
        // Predicated region
        $region33: #{tpu_custom_call.1} parent=27 // pred_check
          %p223 = pneg %p90
        $region34: #{tpu_custom_call.1} parent=27 // pred_check_branch
          %225 = sbr.rel (%p223) target = $region36
        $region35: #{tpu_custom_call.1} parent=27 // pred_region
          %226 = dma.done %s219, 128
        $region36: #{tpu_custom_call.1} parent=27 // pred_fallthru
          _
        %s227 = sand.u32 %s49, 1
        %s228 = scalar_lea.sflag [#allocation3], %s227
        %s229 = sand.u32 %s49, 1
        %s230 = smul.addr %s229, 152
        %s231 = scalar_lea.vmem [#allocation2], %s230
        %p232 = pneg %p62
        %p233 = pneg %p59
        %s234 = sand.u32 %s77, 1
        %s235 = scalar_lea.sflag [#allocation6], %s234
        %s236 = sand.u32 %s77, 1
        %s237 = smul.addr %s236, 8
        %s238 = scalar_lea.vmem [#allocation5], %s237
        %p239 = pneg %p90
        %p240 = pneg %p87
        %p241 = pneg %p116
        %p242 = pneg %p113
        %s243 = sand.u32 %s103, 1
        %s244 = scalar_lea.sflag [#allocation4], %s243
        %s245 = sand.u32 %s103, 1
        %s246 = smul.addr %s245, 152
        %s247 = scalar_lea.vmem [#allocation7], %s246
        %p248 = pneg %p142
        %p249 = pneg %p139
        %s250 = sand.u32 %s129, 1
        %s251 = scalar_lea.sflag [#allocation9], %s250
        %s252 = sand.u32 %s129, 1
        %s253 = smul.addr %s252, 152
        %s254 = scalar_lea.vmem [#allocation8], %s253
        %p255 = scmp.eq.s32.totalorder %s32, 0
        // Predicated region
        $region37: #{tpu_custom_call.1} parent=27 // pred_check
          %p256 = pneg %p255
        $region38: #{tpu_custom_call.1} parent=27 // pred_check_branch
          %258 = sbr.rel (%p256) target = $region40
        $region39: #{tpu_custom_call.1} parent=27 // pred_region
          %259 = vst [vmem:[%s247] sm:$0xff] 0.0
          %260 = vst [vmem:[%s247 + $0x8] sm:$0xff] 0.0
          %261 = vst [vmem:[%s247 + $0x10] sm:$0xff] 0.0
          %262 = vst [vmem:[%s247 + $0x18] sm:$0xff] 0.0
          %263 = vst [vmem:[%s247 + $0x20] sm:$0xff] 0.0
          %264 = vst [vmem:[%s247 + $0x28] sm:$0xff] 0.0
          %265 = vst [vmem:[%s247 + $0x30] sm:$0xff] 0.0
          %266 = vst [vmem:[%s247 + $0x38] sm:$0xff] 0.0
          %267 = vst [vmem:[%s247 + $0x40] sm:$0xff] 0.0
          %268 = vst [vmem:[%s247 + $0x48] sm:$0xff] 0.0
          %269 = vst [vmem:[%s247 + $0x50] sm:$0xff] 0.0
          %270 = vst [vmem:[%s247 + $0x58] sm:$0xff] 0.0
          %271 = vst [vmem:[%s247 + $0x60] sm:$0xff] 0.0
          %272 = vst [vmem:[%s247 + $0x68] sm:$0xff] 0.0
          %273 = vst [vmem:[%s247 + $0x70] sm:$0xff] 0.0
          %274 = vst [vmem:[%s247 + $0x78] sm:$0xff] 0.0
          %275 = vst [vmem:[%s247 + $0x80] sm:$0xff] 0.0
          %276 = vst [vmem:[%s247 + $0x88] sm:$0xff] 0.0
          %277 = vst [vmem:[%s247 + $0x90] sm:$0xff] 0.0
          %278 = vst [vmem:[%s254] sm:$0xff] 0.0
          %279 = vst [vmem:[%s254 + $0x8] sm:$0xff] 0.0
          %280 = vst [vmem:[%s254 + $0x10] sm:$0xff] 0.0
          %281 = vst [vmem:[%s254 + $0x18] sm:$0xff] 0.0
          %282 = vst [vmem:[%s254 + $0x20] sm:$0xff] 0.0
          %283 = vst [vmem:[%s254 + $0x28] sm:$0xff] 0.0
          %284 = vst [vmem:[%s254 + $0x30] sm:$0xff] 0.0
          %285 = vst [vmem:[%s254 + $0x38] sm:$0xff] 0.0
          %286 = vst [vmem:[%s254 + $0x40] sm:$0xff] 0.0
          %287 = vst [vmem:[%s254 + $0x48] sm:$0xff] 0.0
          %288 = vst [vmem:[%s254 + $0x50] sm:$0xff] 0.0
          %289 = vst [vmem:[%s254 + $0x58] sm:$0xff] 0.0
          %290 = vst [vmem:[%s254 + $0x60] sm:$0xff] 0.0
          %291 = vst [vmem:[%s254 + $0x68] sm:$0xff] 0.0
          %292 = vst [vmem:[%s254 + $0x70] sm:$0xff] 0.0
          %293 = vst [vmem:[%s254 + $0x78] sm:$0xff] 0.0
          %294 = vst [vmem:[%s254 + $0x80] sm:$0xff] 0.0
          %295 = vst [vmem:[%s254 + $0x88] sm:$0xff] 0.0
          %296 = vst [vmem:[%s254 + $0x90] sm:$0xff] 0.0
        $region40: #{tpu_custom_call.1} parent=27 // pred_fallthru
          _
        %v297 = vld [vmem:[%s213] sm:$0xff]
        %v298 = vld [vmem:[%s213 + $0x8] sm:$0xff]
        %v299 = vld [vmem:[%s213 + $0x10] sm:$0xff]
        %v300 = vld [vmem:[%s213 + $0x18] sm:$0xff]
        %v301 = vld [vmem:[%s213 + $0x20] sm:$0xff]
        %v302 = vld [vmem:[%s213 + $0x28] sm:$0xff]
        %v303 = vld [vmem:[%s213 + $0x30] sm:$0xff]
        %v304 = vld [vmem:[%s213 + $0x38] sm:$0xff]
        %v305 = vld [vmem:[%s213 + $0x40] sm:$0xff]
        %v306 = vld [vmem:[%s213 + $0x48] sm:$0xff]
        %v307 = vld [vmem:[%s213 + $0x50] sm:$0xff]
        %v308 = vld [vmem:[%s213 + $0x58] sm:$0xff]
        %v309 = vld [vmem:[%s213 + $0x60] sm:$0xff]
        %v310 = vld [vmem:[%s213 + $0x68] sm:$0xff]
        %v311 = vld [vmem:[%s213 + $0x70] sm:$0xff]
        %v312 = vld [vmem:[%s213 + $0x78] sm:$0xff]
        %v313 = vld [vmem:[%s213 + $0x80] sm:$0xff]
        %v314 = vld [vmem:[%s213 + $0x88] sm:$0xff]
        %v315 = vld [vmem:[%s213 + $0x90] sm:$0xff]
        %v316 = vld [vmem:[%s222] sm:$0xff]
        %v317 = vmax.f32 %v297, %v301
        %v318 = vmax.f32 %v298, %v302
        %v319 = vmax.f32 %v299, %v303
        %v320 = vmax.f32 %v300, %v304
        %v321 = vmax.f32 %v317, %v305
        %v322 = vmax.f32 %v318, %v306
        %v323 = vmax.f32 %v319, %v307
        %v324 = vmax.f32 %v320, %v308
        %v325 = vmax.f32 %v321, %v309
        %v326 = vmax.f32 %v322, %v310
        %v327 = vmax.f32 %v323, %v311
        %v328 = vmax.f32 %v324, %v312
        %v329 = vmax.f32 %v325, %v313
        %v330 = vmax.f32 %v326, %v314
        %v331 = vmax.f32 %v327, %v315
        %v332 = vmax.f32 %v329, %v330
        %v333 = vmax.f32 %v331, %v328
        %v334 = vmax.f32 %v332, %v333
        %v335 = vsub.f32 %v297, %v334
        %v336 = vsub.f32 %v298, %v334
        %v337 = vsub.f32 %v299, %v334
        %v338 = vsub.f32 %v300, %v334
        %v339 = vsub.f32 %v301, %v334
        %v340 = vsub.f32 %v302, %v334
        %v341 = vsub.f32 %v303, %v334
        %v342 = vsub.f32 %v304, %v334
        %v343 = vsub.f32 %v305, %v334
        %v344 = vsub.f32 %v306, %v334
        %v345 = vsub.f32 %v307, %v334
        %v346 = vsub.f32 %v308, %v334
        %v347 = vsub.f32 %v309, %v334
        %v348 = vsub.f32 %v310, %v334
        %v349 = vsub.f32 %v311, %v334
        %v350 = vsub.f32 %v312, %v334
        %v351 = vsub.f32 %v313, %v334
        %v352 = vsub.f32 %v314, %v334
        %v353 = vsub.f32 %v315, %v334
        %v354 = vmul.f32 %v335, 1.442695
        %v355 = vpow.pop %v354
        %v356 = vmul.f32 %v336, 1.442695
        %v357 = vpow.pop %v356
        %v358 = vmul.f32 %v337, 1.442695
        %v359 = vpow.pop %v358
        %v360 = vmul.f32 %v338, 1.442695
        %v361 = vpow.pop %v360
        %v362 = vmul.f32 %v339, 1.442695
        %v363 = vpow.pop %v362
        %v364 = vmul.f32 %v340, 1.442695
        %v365 = vpow.pop %v364
        %v366 = vmul.f32 %v341, 1.442695
        %v367 = vpow.pop %v366
        %v368 = vmul.f32 %v342, 1.442695
        %v369 = vpow.pop %v368
        %v370 = vmul.f32 %v343, 1.442695
        %v371 = vpow.pop %v370
        %v372 = vmul.f32 %v344, 1.442695
        %v373 = vpow.pop %v372
        %v374 = vmul.f32 %v345, 1.442695
        %v375 = vpow.pop %v374
        %v376 = vmul.f32 %v346, 1.442695
        %v377 = vpow.pop %v376
        %v378 = vmul.f32 %v347, 1.442695
        %v379 = vpow.pop %v378
        %v380 = vmul.f32 %v348, 1.442695
        %v381 = vpow.pop %v380
        %v382 = vmul.f32 %v349, 1.442695
        %v383 = vpow.pop %v382
        %v384 = vmul.f32 %v350, 1.442695
        %v385 = vpow.pop %v384
        %v386 = vmul.f32 %v351, 1.442695
        %v387 = vpow.pop %v386
        %v388 = vmul.f32 %v352, 1.442695
        %v389 = vpow.pop %v388
        %v390 = vmul.f32 %v353, 1.442695
        %v391 = vpow.pop %v390
        %v392 = vadd.f32 %v355, %v357
        %v393 = vadd.f32 %v392, %v359
        %v394 = vadd.f32 %v393, %v361
        %v395 = vadd.f32 %v394, %v363
        %v396 = vadd.f32 %v395, %v365
        %v397 = vadd.f32 %v396, %v367
        %v398 = vadd.f32 %v397, %v369
        %v399 = vadd.f32 %v398, %v371
        %v400 = vadd.f32 %v399, %v373
        %v401 = vadd.f32 %v400, %v375
        %v402 = vadd.f32 %v401, %v377
        %v403 = vadd.f32 %v402, %v379
        %v404 = vadd.f32 %v403, %v381
        %v405 = vadd.f32 %v404, %v383
        %v406 = vadd.f32 %v405, %v385
        %v407 = vadd.f32 %v406, %v387
        %v408 = vadd.f32 %v407, %v389
        %v409 = vadd.f32 %v408, %v391
        %v410 = vlog2.pop %v409
        %v411 = vmul.f32 %v410, 0.6931472
        %v412 = vadd.f32 %v334, %v411
        %vm413 = vcmp.eq.s32.totalorder %v316, 0
        %v414 = vsub.f32 %v412, %v297
        %v415 = vsel %vm413, %v414, 0.0
        %v416 = vsel %vm413, 1.0, 0.0
        %v417 = vld [vmem:[%s247] sm:$0xff]
        %v418 = vadd.f32 %v415, 0.0
        %v419 = vadd.f32 %v417, %v418
        %420 = vst [vmem:[%s247] sm:$0xff] %v419
        %v421 = vld [vmem:[%s254] sm:$0xff]
        %v422 = vadd.f32 %v416, 0.0
        %v423 = vadd.f32 %v421, %v422
        %424 = vst [vmem:[%s254] sm:$0xff] %v423
        %vm425 = vcmp.eq.s32.totalorder %v316, 1
        %v426 = vsub.f32 %v412, %v298
        %v427 = vsel %vm425, %v426, 0.0
        %v428 = vsel %vm425, 1.0, 0.0
        %s429 = scalar_lea.vmem %s247, 8 [#allocation7]
        %v430 = vld [vmem:[%s429] sm:$0xff]
        %v431 = vadd.f32 %v427, 0.0
        %v432 = vadd.f32 %v430, %v431
        %433 = vst [vmem:[%s429] sm:$0xff] %v432
        %s434 = scalar_lea.vmem %s254, 8 [#allocation8]
        %v435 = vld [vmem:[%s434] sm:$0xff]
        %v436 = vadd.f32 %v428, 0.0
        %v437 = vadd.f32 %v435, %v436
        %438 = vst [vmem:[%s434] sm:$0xff] %v437
        %vm439 = vcmp.eq.s32.totalorder %v316, 2
        %v440 = vsub.f32 %v412, %v299
        %v441 = vsel %vm439, %v440, 0.0
        %v442 = vsel %vm439, 1.0, 0.0
        %s443 = scalar_lea.vmem %s247, 16 [#allocation7]
        %v444 = vld [vmem:[%s443] sm:$0xff]
        %v445 = vadd.f32 %v441, 0.0
        %v446 = vadd.f32 %v444, %v445
        %447 = vst [vmem:[%s443] sm:$0xff] %v446
        %s448 = scalar_lea.vmem %s254, 16 [#allocation8]
        %v449 = vld [vmem:[%s448] sm:$0xff]
        %v450 = vadd.f32 %v442, 0.0
        %v451 = vadd.f32 %v449, %v450
        %452 = vst [vmem:[%s448] sm:$0xff] %v451
        %vm453 = vcmp.eq.s32.totalorder %v316, 3
        %v454 = vsub.f32 %v412, %v300
        %v455 = vsel %vm453, %v454, 0.0
        %v456 = vsel %vm453, 1.0, 0.0
        %s457 = scalar_lea.vmem %s247, 24 [#allocation7]
        %v458 = vld [vmem:[%s457] sm:$0xff]
        %v459 = vadd.f32 %v455, 0.0
        %v460 = vadd.f32 %v458, %v459
        %461 = vst [vmem:[%s457] sm:$0xff] %v460
        %s462 = scalar_lea.vmem %s254, 24 [#allocation8]
        %v463 = vld [vmem:[%s462] sm:$0xff]
        %v464 = vadd.f32 %v456, 0.0
        %v465 = vadd.f32 %v463, %v464
        %466 = vst [vmem:[%s462] sm:$0xff] %v465
        %vm467 = vcmp.eq.s32.totalorder %v316, 4
        %v468 = vsub.f32 %v412, %v301
        %v469 = vsel %vm467, %v468, 0.0
        %v470 = vsel %vm467, 1.0, 0.0
        %s471 = scalar_lea.vmem %s247, 32 [#allocation7]
        %v472 = vld [vmem:[%s471] sm:$0xff]
        %v473 = vadd.f32 %v469, 0.0
        %v474 = vadd.f32 %v472, %v473
        %475 = vst [vmem:[%s471] sm:$0xff] %v474
        %s476 = scalar_lea.vmem %s254, 32 [#allocation8]
        %v477 = vld [vmem:[%s476] sm:$0xff]
        %v478 = vadd.f32 %v470, 0.0
        %v479 = vadd.f32 %v477, %v478
        %480 = vst [vmem:[%s476] sm:$0xff] %v479
        %vm481 = vcmp.eq.s32.totalorder %v316, 5
        %v482 = vsub.f32 %v412, %v302
        %v483 = vsel %vm481, %v482, 0.0
        %v484 = vsel %vm481, 1.0, 0.0
        %s485 = scalar_lea.vmem %s247, 40 [#allocation7]
        %v486 = vld [vmem:[%s485] sm:$0xff]
        %v487 = vadd.f32 %v483, 0.0
        %v488 = vadd.f32 %v486, %v487
        %489 = vst [vmem:[%s485] sm:$0xff] %v488
        %s490 = scalar_lea.vmem %s254, 40 [#allocation8]
        %v491 = vld [vmem:[%s490] sm:$0xff]
        %v492 = vadd.f32 %v484, 0.0
        %v493 = vadd.f32 %v491, %v492
        %494 = vst [vmem:[%s490] sm:$0xff] %v493
        %vm495 = vcmp.eq.s32.totalorder %v316, 6
        %v496 = vsub.f32 %v412, %v303
        %v497 = vsel %vm495, %v496, 0.0
        %v498 = vsel %vm495, 1.0, 0.0
        %s499 = scalar_lea.vmem %s247, 48 [#allocation7]
        %v500 = vld [vmem:[%s499] sm:$0xff]
        %v501 = vadd.f32 %v497, 0.0
        %v502 = vadd.f32 %v500, %v501
        %503 = vst [vmem:[%s499] sm:$0xff] %v502
        %s504 = scalar_lea.vmem %s254, 48 [#allocation8]
        %v505 = vld [vmem:[%s504] sm:$0xff]
        %v506 = vadd.f32 %v498, 0.0
        %v507 = vadd.f32 %v505, %v506
        %508 = vst [vmem:[%s504] sm:$0xff] %v507
        %vm509 = vcmp.eq.s32.totalorder %v316, 7
        %v510 = vsub.f32 %v412, %v304
        %v511 = vsel %vm509, %v510, 0.0
        %v512 = vsel %vm509, 1.0, 0.0
        %s513 = scalar_lea.vmem %s247, 56 [#allocation7]
        %v514 = vld [vmem:[%s513] sm:$0xff]
        %v515 = vadd.f32 %v511, 0.0
        %v516 = vadd.f32 %v514, %v515
        %517 = vst [vmem:[%s513] sm:$0xff] %v516
        %s518 = scalar_lea.vmem %s254, 56 [#allocation8]
        %v519 = vld [vmem:[%s518] sm:$0xff]
        %v520 = vadd.f32 %v512, 0.0
        %v521 = vadd.f32 %v519, %v520
        %522 = vst [vmem:[%s518] sm:$0xff] %v521
        %vm523 = vcmp.eq.s32.totalorder %v316, 8
        %v524 = vsub.f32 %v412, %v305
        %v525 = vsel %vm523, %v524, 0.0
        %v526 = vsel %vm523, 1.0, 0.0
        %s527 = scalar_lea.vmem %s247, 64 [#allocation7]
        %v528 = vld [vmem:[%s527] sm:$0xff]
        %v529 = vadd.f32 %v525, 0.0
        %v530 = vadd.f32 %v528, %v529
        %531 = vst [vmem:[%s527] sm:$0xff] %v530
        %s532 = scalar_lea.vmem %s254, 64 [#allocation8]
        %v533 = vld [vmem:[%s532] sm:$0xff]
        %v534 = vadd.f32 %v526, 0.0
        %v535 = vadd.f32 %v533, %v534
        %536 = vst [vmem:[%s532] sm:$0xff] %v535
        %vm537 = vcmp.eq.s32.totalorder %v316, 9
        %v538 = vsub.f32 %v412, %v306
        %v539 = vsel %vm537, %v538, 0.0
        %v540 = vsel %vm537, 1.0, 0.0
        %s541 = scalar_lea.vmem %s247, 72 [#allocation7]
        %v542 = vld [vmem:[%s541] sm:$0xff]
        %v543 = vadd.f32 %v539, 0.0
        %v544 = vadd.f32 %v542, %v543
        %545 = vst [vmem:[%s541] sm:$0xff] %v544
        %s546 = scalar_lea.vmem %s254, 72 [#allocation8]
        %v547 = vld [vmem:[%s546] sm:$0xff]
        %v548 = vadd.f32 %v540, 0.0
        %v549 = vadd.f32 %v547, %v548
        %550 = vst [vmem:[%s546] sm:$0xff] %v549
        %vm551 = vcmp.eq.s32.totalorder %v316, 10
        %v552 = vsub.f32 %v412, %v307
        %v553 = vsel %vm551, %v552, 0.0
        %v554 = vsel %vm551, 1.0, 0.0
        %s555 = scalar_lea.vmem %s247, 80 [#allocation7]
        %v556 = vld [vmem:[%s555] sm:$0xff]
        %v557 = vadd.f32 %v553, 0.0
        %v558 = vadd.f32 %v556, %v557
        %559 = vst [vmem:[%s555] sm:$0xff] %v558
        %s560 = scalar_lea.vmem %s254, 80 [#allocation8]
        %v561 = vld [vmem:[%s560] sm:$0xff]
        %v562 = vadd.f32 %v554, 0.0
        %v563 = vadd.f32 %v561, %v562
        %564 = vst [vmem:[%s560] sm:$0xff] %v563
        %vm565 = vcmp.eq.s32.totalorder %v316, 11
        %v566 = vsub.f32 %v412, %v308
        %v567 = vsel %vm565, %v566, 0.0
        %v568 = vsel %vm565, 1.0, 0.0
        %s569 = scalar_lea.vmem %s247, 88 [#allocation7]
        %v570 = vld [vmem:[%s569] sm:$0xff]
        %v571 = vadd.f32 %v567, 0.0
        %v572 = vadd.f32 %v570, %v571
        %573 = vst [vmem:[%s569] sm:$0xff] %v572
        %s574 = scalar_lea.vmem %s254, 88 [#allocation8]
        %v575 = vld [vmem:[%s574] sm:$0xff]
        %v576 = vadd.f32 %v568, 0.0
        %v577 = vadd.f32 %v575, %v576
        %578 = vst [vmem:[%s574] sm:$0xff] %v577
        %vm579 = vcmp.eq.s32.totalorder %v316, 12
        %v580 = vsub.f32 %v412, %v309
        %v581 = vsel %vm579, %v580, 0.0
        %v582 = vsel %vm579, 1.0, 0.0
        %s583 = scalar_lea.vmem %s247, 96 [#allocation7]
        %v584 = vld [vmem:[%s583] sm:$0xff]
        %v585 = vadd.f32 %v581, 0.0
        %v586 = vadd.f32 %v584, %v585
        %587 = vst [vmem:[%s583] sm:$0xff] %v586
        %s588 = scalar_lea.vmem %s254, 96 [#allocation8]
        %v589 = vld [vmem:[%s588] sm:$0xff]
        %v590 = vadd.f32 %v582, 0.0
        %v591 = vadd.f32 %v589, %v590
        %592 = vst [vmem:[%s588] sm:$0xff] %v591
        %vm593 = vcmp.eq.s32.totalorder %v316, 13
        %v594 = vsub.f32 %v412, %v310
        %v595 = vsel %vm593, %v594, 0.0
        %v596 = vsel %vm593, 1.0, 0.0
        %s597 = scalar_lea.vmem %s247, 104 [#allocation7]
        %v598 = vld [vmem:[%s597] sm:$0xff]
        %v599 = vadd.f32 %v595, 0.0
        %v600 = vadd.f32 %v598, %v599
        %601 = vst [vmem:[%s597] sm:$0xff] %v600
        %s602 = scalar_lea.vmem %s254, 104 [#allocation8]
        %v603 = vld [vmem:[%s602] sm:$0xff]
        %v604 = vadd.f32 %v596, 0.0
        %v605 = vadd.f32 %v603, %v604
        %606 = vst [vmem:[%s602] sm:$0xff] %v605
        %vm607 = vcmp.eq.s32.totalorder %v316, 14
        %v608 = vsub.f32 %v412, %v311
        %v609 = vsel %vm607, %v608, 0.0
        %v610 = vsel %vm607, 1.0, 0.0
        %s611 = scalar_lea.vmem %s247, 112 [#allocation7]
        %v612 = vld [vmem:[%s611] sm:$0xff]
        %v613 = vadd.f32 %v609, 0.0
        %v614 = vadd.f32 %v612, %v613
        %615 = vst [vmem:[%s611] sm:$0xff] %v614
        %s616 = scalar_lea.vmem %s254, 112 [#allocation8]
        %v617 = vld [vmem:[%s616] sm:$0xff]
        %v618 = vadd.f32 %v610, 0.0
        %v619 = vadd.f32 %v617, %v618
        %620 = vst [vmem:[%s616] sm:$0xff] %v619
        %vm621 = vcmp.eq.s32.totalorder %v316, 15
        %v622 = vsub.f32 %v412, %v312
        %v623 = vsel %vm621, %v622, 0.0
        %v624 = vsel %vm621, 1.0, 0.0
        %s625 = scalar_lea.vmem %s247, 120 [#allocation7]
        %v626 = vld [vmem:[%s625] sm:$0xff]
        %v627 = vadd.f32 %v623, 0.0
        %v628 = vadd.f32 %v626, %v627
        %629 = vst [vmem:[%s625] sm:$0xff] %v628
        %s630 = scalar_lea.vmem %s254, 120 [#allocation8]
        %v631 = vld [vmem:[%s630] sm:$0xff]
        %v632 = vadd.f32 %v624, 0.0
        %v633 = vadd.f32 %v631, %v632
        %634 = vst [vmem:[%s630] sm:$0xff] %v633
        %vm635 = vcmp.eq.s32.totalorder %v316, 16
        %v636 = vsub.f32 %v412, %v313
        %v637 = vsel %vm635, %v636, 0.0
        %v638 = vsel %vm635, 1.0, 0.0
        %s639 = scalar_lea.vmem %s247, 128 [#allocation7]
        %v640 = vld [vmem:[%s639] sm:$0xff]
        %v641 = vadd.f32 %v637, 0.0
        %v642 = vadd.f32 %v640, %v641
        %643 = vst [vmem:[%s639] sm:$0xff] %v642
        %s644 = scalar_lea.vmem %s254, 128 [#allocation8]
        %v645 = vld [vmem:[%s644] sm:$0xff]
        %v646 = vadd.f32 %v638, 0.0
        %v647 = vadd.f32 %v645, %v646
        %648 = vst [vmem:[%s644] sm:$0xff] %v647
        %vm649 = vcmp.eq.s32.totalorder %v316, 17
        %v650 = vsub.f32 %v412, %v314
        %v651 = vsel %vm649, %v650, 0.0
        %v652 = vsel %vm649, 1.0, 0.0
        %s653 = scalar_lea.vmem %s247, 136 [#allocation7]
        %v654 = vld [vmem:[%s653] sm:$0xff]
        %v655 = vadd.f32 %v651, 0.0
        %v656 = vadd.f32 %v654, %v655
        %657 = vst [vmem:[%s653] sm:$0xff] %v656
        %s658 = scalar_lea.vmem %s254, 136 [#allocation8]
        %v659 = vld [vmem:[%s658] sm:$0xff]
        %v660 = vadd.f32 %v652, 0.0
        %v661 = vadd.f32 %v659, %v660
        %662 = vst [vmem:[%s658] sm:$0xff] %v661
        %vm663 = vcmp.eq.s32.totalorder %v316, 18
        %v664 = vsub.f32 %v412, %v315
        %v665 = vsel %vm663, %v664, 0.0
        %v666 = vsel %vm663, 1.0, 0.0
        %s667 = scalar_lea.vmem %s247, 144 [#allocation7]
        %v668 = vld [vmem:[%s667] sm:$0xff]
        %v669 = vadd.f32 %v665, 0.0
        %v670 = vadd.f32 %v668, %v669
        %671 = vst [vmem:[%s667] sm:$0xff] %v670
        %s672 = scalar_lea.vmem %s254, 144 [#allocation8]
        %v673 = vld [vmem:[%s672] sm:$0xff]
        %v674 = vadd.f32 %v666, 0.0
        %v675 = vadd.f32 %v673, %v674
        %676 = vst [vmem:[%s672] sm:$0xff] %v675
        %s677 = sand.u32 %s103, 1
        %s678 = scalar_lea.sflag [#allocation4], %s677
        %s679 = sand.u32 %s103, 1
        %s680 = smul.addr %s679, 152
        %s681 = scalar_lea.vmem [#allocation7], %s680
        %s682 = sand.u32 %s129, 1
        %s683 = scalar_lea.sflag [#allocation9], %s682
        %s684 = sand.u32 %s129, 1
        %s685 = smul.addr %s684, 152
        %s686 = scalar_lea.vmem [#allocation8], %s685
        // Predicated region
        $region41: #{tpu_custom_call.1} parent=27 // pred_check
          %p687 = pneg %p113
        $region42: #{tpu_custom_call.1} parent=27 // pred_check_branch
          %689 = sbr.rel (%p687) target = $region44
        $region43: #{tpu_custom_call.1} parent=27 // pred_region
          %s691 = ssub.s32 2432, 2432
          %692 = vsyncadd %s678, %s691
          %s693 = smul.addr %s31, 19
          %s694 = smul.addr %s693, 128
          %s695 = scalar_lea.hbm %s2, %s694
          %s696 = sshll.u32 %s681, 4
          %s697 = int_to_ptr.vmem [resolvable:$true] %s696
          %702 = dma.vmem_to_hbm [thread:$0]  %s697, 2432, %s695, %s678, 128, 128, 8
        $region44: #{tpu_custom_call.1} parent=27 // pred_fallthru
          _
        // Predicated region
        $region45: #{tpu_custom_call.1} parent=27 // pred_check
          %p703 = pneg %p139
        $region46: #{tpu_custom_call.1} parent=27 // pred_check_branch
          %705 = sbr.rel (%p703) target = $region48
        $region47: #{tpu_custom_call.1} parent=27 // pred_region
          %s707 = ssub.s32 2432, 2432
          %708 = vsyncadd %s683, %s707
          %s709 = smul.addr %s31, 19
          %s710 = smul.addr %s709, 128
          %s711 = scalar_lea.hbm %s3, %s710
          %s712 = sshll.u32 %s686, 4
          %s713 = int_to_ptr.vmem [resolvable:$true] %s712
          %718 = dma.vmem_to_hbm [thread:$0]  %s713, 2432, %s711, %s683, 128, 128, 8
        $region48: #{tpu_custom_call.1} parent=27 // pred_fallthru
          _
      $region28: #{tpu_custom_call.1} parent=5 // pred_fallthru
        _
      %p719 = scmp.le.s32.totalorder 2, %s22
      // Predicated region
      $region49: #{tpu_custom_call.1} parent=5 // pred_check
        %p720 = pneg %p719
      $region50: #{tpu_custom_call.1} parent=5 // pred_check_branch
        %722 = sbr.rel (%p720) target = $region52
      $region51: #{tpu_custom_call.1} parent=5 // pred_region
        %s723 = ssub.s32 %s22, 2
        // Predicated region
        $region53: #{tpu_custom_call.1} parent=51 // pred_check
          %p724 = pneg %p119
        $region54: #{tpu_custom_call.1} parent=51 // pred_check_branch
          %726 = sbr.rel (%p724) target = $region56
        $region55: #{tpu_custom_call.1} parent=51 // pred_region
          %s727 = sand.u32 %s104, 1
          %s728 = scalar_lea.sflag [#allocation4], %s727
          %s729 = sand.u32 %s104, 1
          %s730 = smul.addr %s729, 152
          %s731 = scalar_lea.vmem [#allocation7], %s730
          %732 = dma.done %s728, 2432
        $region56: #{tpu_custom_call.1} parent=51 // pred_fallthru
          _
        // Predicated region
        $region57: #{tpu_custom_call.1} parent=51 // pred_check
          %p733 = pneg %p145
        $region58: #{tpu_custom_call.1} parent=51 // pred_check_branch
          %735 = sbr.rel (%p733) target = $region60
        $region59: #{tpu_custom_call.1} parent=51 // pred_region
          %s736 = sand.u32 %s130, 1
          %s737 = scalar_lea.sflag [#allocation9], %s736
          %s738 = sand.u32 %s130, 1
          %s739 = smul.addr %s738, 152
          %s740 = scalar_lea.vmem [#allocation8], %s739
          %741 = dma.done %s737, 2432
        $region60: #{tpu_custom_call.1} parent=51 // pred_fallthru
          _
      $region52: #{tpu_custom_call.1} parent=5 // pred_fallthru
        _
    $region6: #{tpu_custom_call.1} parent=1 // loop_footer
      %s26 = sadd.s32 1, %s22
    $region7: #{tpu_custom_call.1} parent=1 // loop_footer_branch
      %21 = sbr.rel target = $region3
    $region8: #{tpu_custom_call.1} parent=1 // loop_exit
      _
    %742 = vsyncpa [#allocation3], 1
    %s743 = scalar_lea.sflag [#allocation3], 1
    %744 = vsyncpa %s743, 1
    %745 = vsyncpa [#allocation6], 1
    %s746 = scalar_lea.sflag [#allocation6], 1
    %747 = vsyncpa %s746, 1
    %748 = vsyncpa [#allocation4], 1
    %s749 = scalar_lea.sflag [#allocation4], 1
    %750 = vsyncpa %s749, 1
    %751 = vsyncpa [#allocation9], 1
    %s752 = scalar_lea.sflag [#allocation9], 1
    %753 = vsyncpa %s752, 1

</llo_original>
